<compile_context>
chip_gen: v7x
topology: tpu7x:2x2x1
jax: 0.10.0
libtpu: 0.0.40
codegen_flags: <defaults>
</compile_context>

<pallas_src>
import jax
import jax.numpy as jnp
import numpy as np
from jax import lax
from jax.experimental import pallas as pl
from jax.experimental.pallas import tpu as pltpu


# --------------------------------------------------------------------------
# Kernel
# --------------------------------------------------------------------------
def _make_kernel(C, D, W, HWp, Bt):
    R = Bt * D          # fused (batch-block, depth) sublane rows

    def kernel(w_ref, m_ref, x_ref, o_ref):
        # w_ref: (54,) f32 SMEM (1/C already folded into [0:27])
        # m_ref: (9, HWp) f32 VMEM per-(kh,kw) boundary masks (0/1)
        # x_ref: (Bt, C, D, HWp); o_ref: (Bt, D, HWp)

        # ---- channel descriptors (sum / max over C); f32 accumulation ----
        ch = x_ref[:, 0, :, :].astype(jnp.float32)           # (Bt, D, HWp)
        ssum = ch
        smax = ch
        for c in range(1, C):
            ch = x_ref[:, c, :, :].astype(jnp.float32)
            ssum = ssum + ch
            smax = jnp.maximum(smax, ch)
        avg = ssum.reshape(R, HWp)     # mean's 1/C folded into avg weights
        mx = smax.reshape(R, HWp)

        # ---- hoist all 54 conv weights out of the tap loops (SMEM sld) ----
        wv = [w_ref[i] for i in range(54)]

        # ---- 3x3 in-plane taps: lane roll + precomputed masks,
        #      3 per-kd partial accumulators (breaks the serial add chain) ----
        acc = [jnp.zeros((R, HWp), jnp.float32) for _ in range(3)]
        for kh in range(3):
            dh = kh - 1
            for kw in range(3):
                dw = kw - 1
                s = dh * W + dw
                if s == 0:
                    sa, sm = avg, mx
                else:
                    sa = pltpu.roll(avg, shift=(-s) % HWp, axis=1)
                    sm = pltpu.roll(mx, shift=(-s) % HWp, axis=1)
                    mask = m_ref[kh * 3 + kw, :].reshape(1, HWp)
                    sa = sa * mask
                    sm = sm * mask
                for kd in range(3):
                    w_avg = wv[kd * 9 + kh * 3 + kw]          # W[0,0,kd,kh,kw]/C
                    w_max = wv[27 + kd * 9 + kh * 3 + kw]     # W[0,1,kd,kh,kw]
                    acc[kd] = acc[kd] + (w_avg * sa + w_max * sm)

        # ---- combine depth taps: out[d] = acc1[d] + acc0[d-1] + acc2[d+1] ----
        dn = pltpu.roll(acc[0], shift=1, axis=0)              # dn[r] = acc0[r-1]
        up = pltpu.roll(acc[2], shift=R - 1, axis=0)          # up[r] = acc2[r+1]
        d_idx = lax.broadcasted_iota(jnp.int32, (Bt, D, HWp), 1).reshape(R, HWp)
        dn = jnp.where(d_idx >= 1, dn, 0.0)
        up = jnp.where(d_idx <= D - 2, up, 0.0)
        conv = acc[1] + dn + up

        # double sigmoid (EUP exp path; matches reference numerics)
        y = jax.nn.sigmoid(jax.nn.sigmoid(conv))
        o_ref[...] = y.reshape(Bt, D, HWp).astype(o_ref.dtype)

    return kernel


# --------------------------------------------------------------------------
# Host-side helpers
# --------------------------------------------------------------------------
def _build_tap_masks(H, W, HWp):
    """(9, HWp) f32 0/1 masks, one per (kh, kw) tap; padded lanes are zero."""
    hh = np.arange(H).reshape(H, 1)
    ww = np.arange(W).reshape(1, W)
    masks = np.zeros((9, HWp), np.float32)
    for kh in range(3):
        dh = kh - 1
        for kw in range(3):
            dw = kw - 1
            m = np.ones((H, W), np.bool_)
            if dh < 0:
                m &= (hh + dh) >= 0
            elif dh > 0:
                m &= (hh + dh) <= H - 1
            if dw < 0:
                m &= (ww + dw) >= 0
            elif dw > 0:
                m &= (ww + dw) <= W - 1
            masks[kh * 3 + kw, : H * W] = m.reshape(-1).astype(np.float32)
    return jnp.asarray(masks)


def _tpu_limits():
    """(physical VMEM bytes, TensorCores per device) with safe fallbacks."""
    vmem_bytes = 64 << 20     # conservative default = v7x per-TC VMEM
    num_cores = 1             # only constrain grid steps when >1 TC detected
    try:
        info = pltpu.get_tpu_info()
        for name in ("vmem_capacity_bytes", "vmem_size_bytes", "vmem_bytes"):
            v = getattr(info, name, None)
            if v:
                vmem_bytes = int(v)
                break
        for name in ("num_cores", "num_tensorcores", "tensorcore_count",
                     "core_count"):
            c = getattr(info, name, None)
            if c:
                num_cores = int(c)
                break
    except Exception:
        pass
    return vmem_bytes, num_cores


def _per_step_bytes(Bt, C, D, HWp, in_itemsize, out_itemsize, n_live_slabs=12):
    """Realistic per-grid-step VMEM footprint (not just the input block)."""
    in_block = Bt * C * D * HWp * in_itemsize        # double-buffered
    out_block = Bt * D * HWp * out_itemsize          # double-buffered
    slabs = n_live_slabs * Bt * D * HWp * 4          # live f32 slab temporaries
    misc = 2 * 9 * HWp * 4 + (64 << 10)              # masks + slack
    return 2 * in_block + 2 * out_block + slabs + misc


def _pick_block_batch(N, C, D, HWp, in_itemsize, out_itemsize, budget,
                      num_cores):
    """Largest divisor of N whose full footprint fits the VMEM budget.
    Keeps >= num_cores grid steps only when the chip has >1 TensorCore."""
    best = 1
    for bt in range(1, N + 1):
        if N % bt:
            continue
        need = _per_step_bytes(bt, C, D, HWp, in_itemsize, out_itemsize)
        if need > budget:
            break
        if num_cores >= 2 and N >= num_cores and (N // bt) < num_cores:
            break
        best = bt
        if need >= (8 << 20):     # per-step overhead already well amortized
            break
    return best


# --------------------------------------------------------------------------
# Wrapper
# --------------------------------------------------------------------------
def spatial_attention_3d(x, w, *, block_batch=None):
    """x: (N, C, D, H, W); w: (1, 2, 3, 3, 3) Conv3d weight (no bias)."""
    N, C, D, H, W = x.shape
    HW = H * W
    HWp = ((HW + 127) // 128) * 128            # lane-dense (pad to 128 lanes)

    x2 = x.reshape(N, C, D, HW)                # free, lane-dense last dim
    if HWp != HW:
        x2 = jnp.pad(x2, ((0, 0), (0, 0), (0, 0), (0, HWp - HW)))

    # conv weights -> SMEM scalars, with 1/C folded into the avg-channel taps
    w_flat = w.astype(jnp.float32).reshape(-1)          # (54,)
    w_flat = w_flat.at[:27].multiply(1.0 / C)           # indices 0..26 = avg ch.

    masks = _build_tap_masks(H, W, HWp)                 # (9, HWp) f32

    in_itemsize = x.dtype.itemsize
    out_itemsize = x.dtype.itemsize

    phys_vmem, num_cores = _tpu_limits()
    vmem_cap = (phys_vmem * 7) // 10                    # headroom under physical
    budget = (vmem_cap * 8) // 10                       # margin inside the limit

    if block_batch is None:
        block_batch = _pick_block_batch(N, C, D, HWp, in_itemsize,
                                        out_itemsize, budget, num_cores)
    Bt = block_batch
    if N % Bt:
        raise ValueError("block_batch must divide N")

    need = _per_step_bytes(Bt, C, D, HWp, in_itemsize, out_itemsize)
    vmem_limit = int(min(vmem_cap, max(2 * need, 16 << 20)))

    kernel = _make_kernel(C, D, W, HWp, Bt)

    cost = pl.CostEstimate(
        flops=int(N * D * HW * (3 * C + 140)),
        transcendentals=int(2 * N * D * HW),
        bytes_accessed=int(x.size * in_itemsize + N * D * HW * out_itemsize),
    )

    out = pl.pallas_call(
        kernel,
        out_shape=jax.ShapeDtypeStruct((N, D, HWp), x.dtype),
        grid=(N // Bt,),
        in_specs=[
            pl.BlockSpec(memory_space=pltpu.MemorySpace.SMEM),     # conv weights
            pl.BlockSpec((9, HWp), lambda n: (0, 0)),              # tap masks
            pl.BlockSpec((Bt, C, D, HWp), lambda n: (n, 0, 0, 0)),  # batch block
        ],
        out_specs=pl.BlockSpec((Bt, D, HWp), lambda n: (n, 0, 0)),
        compiler_params=pltpu.CompilerParams(
            dimension_semantics=("parallel",),
            vmem_limit_bytes=vmem_limit,
        ),
        cost_estimate=cost,
    )(w_flat, masks, x2)

    if HWp != HW:
        out = out[:, :, :HW]
    return out.reshape(N, 1, D, H, W)


# --------------------------------------------------------------------------
# Pure-JAX reference + test
# --------------------------------------------------------------------------
def _reference(x, w):
    avg = jnp.mean(x, axis=1, keepdims=True)
    mx = jnp.max(x, axis=1, keepdims=True)
    cat = jnp.concatenate([avg, mx], axis=1)
    conv = lax.conv_general_dilated(
        cat, w,
        window_strides=(1, 1, 1),
        padding=((1, 1), (1, 1), (1, 1)),
        dimension_numbers=("NCDHW", "OIDHW", "NCDHW"),
    )
    return jax.nn.sigmoid(jax.nn.sigmoid(conv))


if __name__ == "__main__":
    key = jax.random.PRNGKey(0)
    kx, kw = jax.random.split(key)

    # Small shapes: batch=2, channels=4, depth=8, spatial=16x16
    N, C, D, H, W = 2, 4, 8, 16, 16
    x = jax.random.normal(kx, (N, C, D, H, W), dtype=jnp.float32)

    # Deterministic Conv3d(2, 1, 3) weight init (kaiming-uniform-like bound)
    fan_in = 2 * 3 * 3 * 3
    bound = 1.0 / np.sqrt(fan_in)
    w = jax.random.uniform(kw, (1, 2, 3, 3, 3), dtype=jnp.float32,
                           minval=-bound, maxval=bound)

    out = spatial_attention_3d(x, w)
    out = jax.block_until_ready(out)

    ref = _reference(x, w)
    assert out.shape == (N, 1, D, H, W)
    np.testing.assert_allclose(np.asarray(out), np.asarray(ref),
                               atol=1e-5, rtol=1e-5)

    print("KERNEL_OK")
</pallas_src>

<mosaic_0001>
module attributes {stable_mosaic.version = 11 : i64} {
  func.func @kernel(%arg0: i32, %arg1: memref<54xf32, #tpu.memory_space<smem>>, %arg2: memref<9x256xf32, #tpu.memory_space<vmem>>, %arg3: memref<2x4x8x256xf32, #tpu.memory_space<vmem>>, %arg4: memref<2x8x256xf32, #tpu.memory_space<vmem>>) attributes {dimension_semantics = [#tpu.dimension_semantics<parallel>], iteration_bounds = array<i64: 1>, scalar_prefetch = 0 : i64, scratch_operands = 0 : i64, tpu.core_type = #tpu.core_type<tc>, window_params = [{transform_indices = @transform_0, window_bounds = array<i64: 54>}, {pipeline_mode = #tpu.pipeline_mode<synchronous>, transform_indices = @transform_1, window_bounds = array<i64: 9, 256>}, {transform_indices = @transform_2, window_bounds = array<i64: 2, 4, 8, 256>}, {transform_indices = @transform_3, window_bounds = array<i64: 2, 8, 256>}]} {
    %c0 = arith.constant 0 : index
    %c0_0 = arith.constant 0 : index
    %c0_1 = arith.constant 0 : index
    %c0_2 = arith.constant 0 : index
    %0 = vector.load %arg3[%c0, %c0_0, %c0_1, %c0_2] : memref<2x4x8x256xf32, #tpu.memory_space<vmem>>, vector<2x1x8x256xf32>
    %1 = vector.shape_cast %0 : vector<2x1x8x256xf32> to vector<2x8x256xf32>
    %c0_3 = arith.constant 0 : index
    %c1 = arith.constant 1 : index
    %c0_4 = arith.constant 0 : index
    %c0_5 = arith.constant 0 : index
    %2 = vector.load %arg3[%c0_3, %c1, %c0_4, %c0_5] : memref<2x4x8x256xf32, #tpu.memory_space<vmem>>, vector<2x1x8x256xf32>
    %3 = vector.shape_cast %2 : vector<2x1x8x256xf32> to vector<2x8x256xf32>
    %4 = arith.addf %1, %3 : vector<2x8x256xf32>
    %5 = arith.maximumf %1, %3 : vector<2x8x256xf32>
    %c0_6 = arith.constant 0 : index
    %c2 = arith.constant 2 : index
    %c0_7 = arith.constant 0 : index
    %c0_8 = arith.constant 0 : index
    %6 = vector.load %arg3[%c0_6, %c2, %c0_7, %c0_8] : memref<2x4x8x256xf32, #tpu.memory_space<vmem>>, vector<2x1x8x256xf32>
    %7 = vector.shape_cast %6 : vector<2x1x8x256xf32> to vector<2x8x256xf32>
    %8 = arith.addf %4, %7 : vector<2x8x256xf32>
    %9 = arith.maximumf %5, %7 : vector<2x8x256xf32>
    %c0_9 = arith.constant 0 : index
    %c3 = arith.constant 3 : index
    %c0_10 = arith.constant 0 : index
    %c0_11 = arith.constant 0 : index
    %10 = vector.load %arg3[%c0_9, %c3, %c0_10, %c0_11] : memref<2x4x8x256xf32, #tpu.memory_space<vmem>>, vector<2x1x8x256xf32>
    %11 = vector.shape_cast %10 : vector<2x1x8x256xf32> to vector<2x8x256xf32>
    %12 = arith.addf %8, %11 : vector<2x8x256xf32>
    %13 = arith.maximumf %9, %11 : vector<2x8x256xf32>
    %14 = vector.shape_cast %12 : vector<2x8x256xf32> to vector<16x256xf32>
    %15 = vector.shape_cast %13 : vector<2x8x256xf32> to vector<16x256xf32>
    %c0_12 = arith.constant 0 : index
    %16 = memref.load %arg1[%c0_12] : memref<54xf32, #tpu.memory_space<smem>>
    %c1_13 = arith.constant 1 : index
    %17 = memref.load %arg1[%c1_13] : memref<54xf32, #tpu.memory_space<smem>>
    %c2_14 = arith.constant 2 : index
    %18 = memref.load %arg1[%c2_14] : memref<54xf32, #tpu.memory_space<smem>>
    %c3_15 = arith.constant 3 : index
    %19 = memref.load %arg1[%c3_15] : memref<54xf32, #tpu.memory_space<smem>>
    %c4 = arith.constant 4 : index
    %20 = memref.load %arg1[%c4] : memref<54xf32, #tpu.memory_space<smem>>
    %c5 = arith.constant 5 : index
    %21 = memref.load %arg1[%c5] : memref<54xf32, #tpu.memory_space<smem>>
    %c6 = arith.constant 6 : index
    %22 = memref.load %arg1[%c6] : memref<54xf32, #tpu.memory_space<smem>>
    %c7 = arith.constant 7 : index
    %23 = memref.load %arg1[%c7] : memref<54xf32, #tpu.memory_space<smem>>
    %c8 = arith.constant 8 : index
    %24 = memref.load %arg1[%c8] : memref<54xf32, #tpu.memory_space<smem>>
    %c9 = arith.constant 9 : index
    %25 = memref.load %arg1[%c9] : memref<54xf32, #tpu.memory_space<smem>>
    %c10 = arith.constant 10 : index
    %26 = memref.load %arg1[%c10] : memref<54xf32, #tpu.memory_space<smem>>
    %c11 = arith.constant 11 : index
    %27 = memref.load %arg1[%c11] : memref<54xf32, #tpu.memory_space<smem>>
    %c12 = arith.constant 12 : index
    %28 = memref.load %arg1[%c12] : memref<54xf32, #tpu.memory_space<smem>>
    %c13 = arith.constant 13 : index
    %29 = memref.load %arg1[%c13] : memref<54xf32, #tpu.memory_space<smem>>
    %c14 = arith.constant 14 : index
    %30 = memref.load %arg1[%c14] : memref<54xf32, #tpu.memory_space<smem>>
    %c15 = arith.constant 15 : index
    %31 = memref.load %arg1[%c15] : memref<54xf32, #tpu.memory_space<smem>>
    %c16 = arith.constant 16 : index
    %32 = memref.load %arg1[%c16] : memref<54xf32, #tpu.memory_space<smem>>
    %c17 = arith.constant 17 : index
    %33 = memref.load %arg1[%c17] : memref<54xf32, #tpu.memory_space<smem>>
    %c18 = arith.constant 18 : index
    %34 = memref.load %arg1[%c18] : memref<54xf32, #tpu.memory_space<smem>>
    %c19 = arith.constant 19 : index
    %35 = memref.load %arg1[%c19] : memref<54xf32, #tpu.memory_space<smem>>
    %c20 = arith.constant 20 : index
    %36 = memref.load %arg1[%c20] : memref<54xf32, #tpu.memory_space<smem>>
    %c21 = arith.constant 21 : index
    %37 = memref.load %arg1[%c21] : memref<54xf32, #tpu.memory_space<smem>>
    %c22 = arith.constant 22 : index
    %38 = memref.load %arg1[%c22] : memref<54xf32, #tpu.memory_space<smem>>
    %c23 = arith.constant 23 : index
    %39 = memref.load %arg1[%c23] : memref<54xf32, #tpu.memory_space<smem>>
    %c24 = arith.constant 24 : index
    %40 = memref.load %arg1[%c24] : memref<54xf32, #tpu.memory_space<smem>>
    %c25 = arith.constant 25 : index
    %41 = memref.load %arg1[%c25] : memref<54xf32, #tpu.memory_space<smem>>
    %c26 = arith.constant 26 : index
    %42 = memref.load %arg1[%c26] : memref<54xf32, #tpu.memory_space<smem>>
    %c27 = arith.constant 27 : index
    %43 = memref.load %arg1[%c27] : memref<54xf32, #tpu.memory_space<smem>>
    %c28 = arith.constant 28 : index
    %44 = memref.load %arg1[%c28] : memref<54xf32, #tpu.memory_space<smem>>
    %c29 = arith.constant 29 : index
    %45 = memref.load %arg1[%c29] : memref<54xf32, #tpu.memory_space<smem>>
    %c30 = arith.constant 30 : index
    %46 = memref.load %arg1[%c30] : memref<54xf32, #tpu.memory_space<smem>>
    %c31 = arith.constant 31 : index
    %47 = memref.load %arg1[%c31] : memref<54xf32, #tpu.memory_space<smem>>
    %c32 = arith.constant 32 : index
    %48 = memref.load %arg1[%c32] : memref<54xf32, #tpu.memory_space<smem>>
    %c33 = arith.constant 33 : index
    %49 = memref.load %arg1[%c33] : memref<54xf32, #tpu.memory_space<smem>>
    %c34 = arith.constant 34 : index
    %50 = memref.load %arg1[%c34] : memref<54xf32, #tpu.memory_space<smem>>
    %c35 = arith.constant 35 : index
    %51 = memref.load %arg1[%c35] : memref<54xf32, #tpu.memory_space<smem>>
    %c36 = arith.constant 36 : index
    %52 = memref.load %arg1[%c36] : memref<54xf32, #tpu.memory_space<smem>>
    %c37 = arith.constant 37 : index
    %53 = memref.load %arg1[%c37] : memref<54xf32, #tpu.memory_space<smem>>
    %c38 = arith.constant 38 : index
    %54 = memref.load %arg1[%c38] : memref<54xf32, #tpu.memory_space<smem>>
    %c39 = arith.constant 39 : index
    %55 = memref.load %arg1[%c39] : memref<54xf32, #tpu.memory_space<smem>>
    %c40 = arith.constant 40 : index
    %56 = memref.load %arg1[%c40] : memref<54xf32, #tpu.memory_space<smem>>
    %c41 = arith.constant 41 : index
    %57 = memref.load %arg1[%c41] : memref<54xf32, #tpu.memory_space<smem>>
    %c42 = arith.constant 42 : index
    %58 = memref.load %arg1[%c42] : memref<54xf32, #tpu.memory_space<smem>>
    %c43 = arith.constant 43 : index
    %59 = memref.load %arg1[%c43] : memref<54xf32, #tpu.memory_space<smem>>
    %c44 = arith.constant 44 : index
    %60 = memref.load %arg1[%c44] : memref<54xf32, #tpu.memory_space<smem>>
    %c45 = arith.constant 45 : index
    %61 = memref.load %arg1[%c45] : memref<54xf32, #tpu.memory_space<smem>>
    %c46 = arith.constant 46 : index
    %62 = memref.load %arg1[%c46] : memref<54xf32, #tpu.memory_space<smem>>
    %c47 = arith.constant 47 : index
    %63 = memref.load %arg1[%c47] : memref<54xf32, #tpu.memory_space<smem>>
    %c48 = arith.constant 48 : index
    %64 = memref.load %arg1[%c48] : memref<54xf32, #tpu.memory_space<smem>>
    %c49 = arith.constant 49 : index
    %65 = memref.load %arg1[%c49] : memref<54xf32, #tpu.memory_space<smem>>
    %c50 = arith.constant 50 : index
    %66 = memref.load %arg1[%c50] : memref<54xf32, #tpu.memory_space<smem>>
    %c51 = arith.constant 51 : index
    %67 = memref.load %arg1[%c51] : memref<54xf32, #tpu.memory_space<smem>>
    %c52 = arith.constant 52 : index
    %68 = memref.load %arg1[%c52] : memref<54xf32, #tpu.memory_space<smem>>
    %c53 = arith.constant 53 : index
    %69 = memref.load %arg1[%c53] : memref<54xf32, #tpu.memory_space<smem>>
    %cst = arith.constant 0.000000e+00 : f32
    %70 = vector.broadcast %cst : f32 to vector<16x256xf32>
    %cst_16 = arith.constant 0.000000e+00 : f32
    %71 = vector.broadcast %cst_16 : f32 to vector<16x256xf32>
    %cst_17 = arith.constant 0.000000e+00 : f32
    %72 = vector.broadcast %cst_17 : f32 to vector<16x256xf32>
    %c17_i32 = arith.constant 17 : i32
    %73 = tpu.dynamic_rotate %14 by %c17_i32 dim 1 : vector<16x256xf32>, i32 -> vector<16x256xf32>
    %c17_i32_18 = arith.constant 17 : i32
    %74 = tpu.dynamic_rotate %15 by %c17_i32_18 dim 1 : vector<16x256xf32>, i32 -> vector<16x256xf32>
    %c0_19 = arith.constant 0 : index
    %c0_20 = arith.constant 0 : index
    %75 = vector.load %arg2[%c0_19, %c0_20] : memref<9x256xf32, #tpu.memory_space<vmem>>, vector<1x256xf32>
    %76 = vector.shape_cast %75 : vector<1x256xf32> to vector<256xf32>
    %77 = vector.shape_cast %76 : vector<256xf32> to vector<1x256xf32>
    %78 = vector.broadcast %77 : vector<1x256xf32> to vector<16x256xf32>
    %79 = arith.mulf %73, %78 : vector<16x256xf32>
    %80 = vector.broadcast %77 : vector<1x256xf32> to vector<16x256xf32>
    %81 = arith.mulf %74, %80 : vector<16x256xf32>
    %82 = vector.broadcast %16 : f32 to vector<16x256xf32>
    %83 = arith.mulf %82, %79 : vector<16x256xf32>
    %84 = vector.broadcast %43 : f32 to vector<16x256xf32>
    %85 = arith.mulf %84, %81 : vector<16x256xf32>
    %86 = arith.addf %83, %85 : vector<16x256xf32>
    %87 = arith.addf %70, %86 : vector<16x256xf32>
    %88 = vector.broadcast %25 : f32 to vector<16x256xf32>
    %89 = arith.mulf %88, %79 : vector<16x256xf32>
    %90 = vector.broadcast %52 : f32 to vector<16x256xf32>
    %91 = arith.mulf %90, %81 : vector<16x256xf32>
    %92 = arith.addf %89, %91 : vector<16x256xf32>
    %93 = arith.addf %71, %92 : vector<16x256xf32>
    %94 = vector.broadcast %34 : f32 to vector<16x256xf32>
    %95 = arith.mulf %94, %79 : vector<16x256xf32>
    %96 = vector.broadcast %61 : f32 to vector<16x256xf32>
    %97 = arith.mulf %96, %81 : vector<16x256xf32>
    %98 = arith.addf %95, %97 : vector<16x256xf32>
    %99 = arith.addf %72, %98 : vector<16x256xf32>
    %c16_i32 = arith.constant 16 : i32
    %100 = tpu.dynamic_rotate %14 by %c16_i32 dim 1 : vector<16x256xf32>, i32 -> vector<16x256xf32>
    %c16_i32_21 = arith.constant 16 : i32
    %101 = tpu.dynamic_rotate %15 by %c16_i32_21 dim 1 : vector<16x256xf32>, i32 -> vector<16x256xf32>
    %c1_22 = arith.constant 1 : index
    %c0_23 = arith.constant 0 : index
    %102 = vector.load %arg2[%c1_22, %c0_23] : memref<9x256xf32, #tpu.memory_space<vmem>>, vector<1x256xf32>
    %103 = vector.shape_cast %102 : vector<1x256xf32> to vector<256xf32>
    %104 = vector.shape_cast %103 : vector<256xf32> to vector<1x256xf32>
    %105 = vector.broadcast %104 : vector<1x256xf32> to vector<16x256xf32>
    %106 = arith.mulf %100, %105 : vector<16x256xf32>
    %107 = vector.broadcast %104 : vector<1x256xf32> to vector<16x256xf32>
    %108 = arith.mulf %101, %107 : vector<16x256xf32>
    %109 = vector.broadcast %17 : f32 to vector<16x256xf32>
    %110 = arith.mulf %109, %106 : vector<16x256xf32>
    %111 = vector.broadcast %44 : f32 to vector<16x256xf32>
    %112 = arith.mulf %111, %108 : vector<16x256xf32>
    %113 = arith.addf %110, %112 : vector<16x256xf32>
    %114 = arith.addf %87, %113 : vector<16x256xf32>
    %115 = vector.broadcast %26 : f32 to vector<16x256xf32>
    %116 = arith.mulf %115, %106 : vector<16x256xf32>
    %117 = vector.broadcast %53 : f32 to vector<16x256xf32>
    %118 = arith.mulf %117, %108 : vector<16x256xf32>
    %119 = arith.addf %116, %118 : vector<16x256xf32>
    %120 = arith.addf %93, %119 : vector<16x256xf32>
    %121 = vector.broadcast %35 : f32 to vector<16x256xf32>
    %122 = arith.mulf %121, %106 : vector<16x256xf32>
    %123 = vector.broadcast %62 : f32 to vector<16x256xf32>
    %124 = arith.mulf %123, %108 : vector<16x256xf32>
    %125 = arith.addf %122, %124 : vector<16x256xf32>
    %126 = arith.addf %99, %125 : vector<16x256xf32>
    %c15_i32 = arith.constant 15 : i32
    %127 = tpu.dynamic_rotate %14 by %c15_i32 dim 1 : vector<16x256xf32>, i32 -> vector<16x256xf32>
    %c15_i32_24 = arith.constant 15 : i32
    %128 = tpu.dynamic_rotate %15 by %c15_i32_24 dim 1 : vector<16x256xf32>, i32 -> vector<16x256xf32>
    %c2_25 = arith.constant 2 : index
    %c0_26 = arith.constant 0 : index
    %129 = vector.load %arg2[%c2_25, %c0_26] : memref<9x256xf32, #tpu.memory_space<vmem>>, vector<1x256xf32>
    %130 = vector.shape_cast %129 : vector<1x256xf32> to vector<256xf32>
    %131 = vector.shape_cast %130 : vector<256xf32> to vector<1x256xf32>
    %132 = vector.broadcast %131 : vector<1x256xf32> to vector<16x256xf32>
    %133 = arith.mulf %127, %132 : vector<16x256xf32>
    %134 = vector.broadcast %131 : vector<1x256xf32> to vector<16x256xf32>
    %135 = arith.mulf %128, %134 : vector<16x256xf32>
    %136 = vector.broadcast %18 : f32 to vector<16x256xf32>
    %137 = arith.mulf %136, %133 : vector<16x256xf32>
    %138 = vector.broadcast %45 : f32 to vector<16x256xf32>
    %139 = arith.mulf %138, %135 : vector<16x256xf32>
    %140 = arith.addf %137, %139 : vector<16x256xf32>
    %141 = arith.addf %114, %140 : vector<16x256xf32>
    %142 = vector.broadcast %27 : f32 to vector<16x256xf32>
    %143 = arith.mulf %142, %133 : vector<16x256xf32>
    %144 = vector.broadcast %54 : f32 to vector<16x256xf32>
    %145 = arith.mulf %144, %135 : vector<16x256xf32>
    %146 = arith.addf %143, %145 : vector<16x256xf32>
    %147 = arith.addf %120, %146 : vector<16x256xf32>
    %148 = vector.broadcast %36 : f32 to vector<16x256xf32>
    %149 = arith.mulf %148, %133 : vector<16x256xf32>
    %150 = vector.broadcast %63 : f32 to vector<16x256xf32>
    %151 = arith.mulf %150, %135 : vector<16x256xf32>
    %152 = arith.addf %149, %151 : vector<16x256xf32>
    %153 = arith.addf %126, %152 : vector<16x256xf32>
    %c1_i32 = arith.constant 1 : i32
    %154 = tpu.dynamic_rotate %14 by %c1_i32 dim 1 : vector<16x256xf32>, i32 -> vector<16x256xf32>
    %c1_i32_27 = arith.constant 1 : i32
    %155 = tpu.dynamic_rotate %15 by %c1_i32_27 dim 1 : vector<16x256xf32>, i32 -> vector<16x256xf32>
    %c3_28 = arith.constant 3 : index
    %c0_29 = arith.constant 0 : index
    %156 = vector.load %arg2[%c3_28, %c0_29] : memref<9x256xf32, #tpu.memory_space<vmem>>, vector<1x256xf32>
    %157 = vector.shape_cast %156 : vector<1x256xf32> to vector<256xf32>
    %158 = vector.shape_cast %157 : vector<256xf32> to vector<1x256xf32>
    %159 = vector.broadcast %158 : vector<1x256xf32> to vector<16x256xf32>
    %160 = arith.mulf %154, %159 : vector<16x256xf32>
    %161 = vector.broadcast %158 : vector<1x256xf32> to vector<16x256xf32>
    %162 = arith.mulf %155, %161 : vector<16x256xf32>
    %163 = vector.broadcast %19 : f32 to vector<16x256xf32>
    %164 = arith.mulf %163, %160 : vector<16x256xf32>
    %165 = vector.broadcast %46 : f32 to vector<16x256xf32>
    %166 = arith.mulf %165, %162 : vector<16x256xf32>
    %167 = arith.addf %164, %166 : vector<16x256xf32>
    %168 = arith.addf %141, %167 : vector<16x256xf32>
    %169 = vector.broadcast %28 : f32 to vector<16x256xf32>
    %170 = arith.mulf %169, %160 : vector<16x256xf32>
    %171 = vector.broadcast %55 : f32 to vector<16x256xf32>
    %172 = arith.mulf %171, %162 : vector<16x256xf32>
    %173 = arith.addf %170, %172 : vector<16x256xf32>
    %174 = arith.addf %147, %173 : vector<16x256xf32>
    %175 = vector.broadcast %37 : f32 to vector<16x256xf32>
    %176 = arith.mulf %175, %160 : vector<16x256xf32>
    %177 = vector.broadcast %64 : f32 to vector<16x256xf32>
    %178 = arith.mulf %177, %162 : vector<16x256xf32>
    %179 = arith.addf %176, %178 : vector<16x256xf32>
    %180 = arith.addf %153, %179 : vector<16x256xf32>
    %181 = vector.broadcast %20 : f32 to vector<16x256xf32>
    %182 = arith.mulf %181, %14 : vector<16x256xf32>
    %183 = vector.broadcast %47 : f32 to vector<16x256xf32>
    %184 = arith.mulf %183, %15 : vector<16x256xf32>
    %185 = arith.addf %182, %184 : vector<16x256xf32>
    %186 = arith.addf %168, %185 : vector<16x256xf32>
    %187 = vector.broadcast %29 : f32 to vector<16x256xf32>
    %188 = arith.mulf %187, %14 : vector<16x256xf32>
    %189 = vector.broadcast %56 : f32 to vector<16x256xf32>
    %190 = arith.mulf %189, %15 : vector<16x256xf32>
    %191 = arith.addf %188, %190 : vector<16x256xf32>
    %192 = arith.addf %174, %191 : vector<16x256xf32>
    %193 = vector.broadcast %38 : f32 to vector<16x256xf32>
    %194 = arith.mulf %193, %14 : vector<16x256xf32>
    %195 = vector.broadcast %65 : f32 to vector<16x256xf32>
    %196 = arith.mulf %195, %15 : vector<16x256xf32>
    %197 = arith.addf %194, %196 : vector<16x256xf32>
    %198 = arith.addf %180, %197 : vector<16x256xf32>
    %c255_i32 = arith.constant 255 : i32
    %199 = tpu.dynamic_rotate %14 by %c255_i32 dim 1 : vector<16x256xf32>, i32 -> vector<16x256xf32>
    %c255_i32_30 = arith.constant 255 : i32
    %200 = tpu.dynamic_rotate %15 by %c255_i32_30 dim 1 : vector<16x256xf32>, i32 -> vector<16x256xf32>
    %c5_31 = arith.constant 5 : index
    %c0_32 = arith.constant 0 : index
    %201 = vector.load %arg2[%c5_31, %c0_32] : memref<9x256xf32, #tpu.memory_space<vmem>>, vector<1x256xf32>
    %202 = vector.shape_cast %201 : vector<1x256xf32> to vector<256xf32>
    %203 = vector.shape_cast %202 : vector<256xf32> to vector<1x256xf32>
    %204 = vector.broadcast %203 : vector<1x256xf32> to vector<16x256xf32>
    %205 = arith.mulf %199, %204 : vector<16x256xf32>
    %206 = vector.broadcast %203 : vector<1x256xf32> to vector<16x256xf32>
    %207 = arith.mulf %200, %206 : vector<16x256xf32>
    %208 = vector.broadcast %21 : f32 to vector<16x256xf32>
    %209 = arith.mulf %208, %205 : vector<16x256xf32>
    %210 = vector.broadcast %48 : f32 to vector<16x256xf32>
    %211 = arith.mulf %210, %207 : vector<16x256xf32>
    %212 = arith.addf %209, %211 : vector<16x256xf32>
    %213 = arith.addf %186, %212 : vector<16x256xf32>
    %214 = vector.broadcast %30 : f32 to vector<16x256xf32>
    %215 = arith.mulf %214, %205 : vector<16x256xf32>
    %216 = vector.broadcast %57 : f32 to vector<16x256xf32>
    %217 = arith.mulf %216, %207 : vector<16x256xf32>
    %218 = arith.addf %215, %217 : vector<16x256xf32>
    %219 = arith.addf %192, %218 : vector<16x256xf32>
    %220 = vector.broadcast %39 : f32 to vector<16x256xf32>
    %221 = arith.mulf %220, %205 : vector<16x256xf32>
    %222 = vector.broadcast %66 : f32 to vector<16x256xf32>
    %223 = arith.mulf %222, %207 : vector<16x256xf32>
    %224 = arith.addf %221, %223 : vector<16x256xf32>
    %225 = arith.addf %198, %224 : vector<16x256xf32>
    %c241_i32 = arith.constant 241 : i32
    %226 = tpu.dynamic_rotate %14 by %c241_i32 dim 1 : vector<16x256xf32>, i32 -> vector<16x256xf32>
    %c241_i32_33 = arith.constant 241 : i32
    %227 = tpu.dynamic_rotate %15 by %c241_i32_33 dim 1 : vector<16x256xf32>, i32 -> vector<16x256xf32>
    %c6_34 = arith.constant 6 : index
    %c0_35 = arith.constant 0 : index
    %228 = vector.load %arg2[%c6_34, %c0_35] : memref<9x256xf32, #tpu.memory_space<vmem>>, vector<1x256xf32>
    %229 = vector.shape_cast %228 : vector<1x256xf32> to vector<256xf32>
    %230 = vector.shape_cast %229 : vector<256xf32> to vector<1x256xf32>
    %231 = vector.broadcast %230 : vector<1x256xf32> to vector<16x256xf32>
    %232 = arith.mulf %226, %231 : vector<16x256xf32>
    %233 = vector.broadcast %230 : vector<1x256xf32> to vector<16x256xf32>
    %234 = arith.mulf %227, %233 : vector<16x256xf32>
    %235 = vector.broadcast %22 : f32 to vector<16x256xf32>
    %236 = arith.mulf %235, %232 : vector<16x256xf32>
    %237 = vector.broadcast %49 : f32 to vector<16x256xf32>
    %238 = arith.mulf %237, %234 : vector<16x256xf32>
    %239 = arith.addf %236, %238 : vector<16x256xf32>
    %240 = arith.addf %213, %239 : vector<16x256xf32>
    %241 = vector.broadcast %31 : f32 to vector<16x256xf32>
    %242 = arith.mulf %241, %232 : vector<16x256xf32>
    %243 = vector.broadcast %58 : f32 to vector<16x256xf32>
    %244 = arith.mulf %243, %234 : vector<16x256xf32>
    %245 = arith.addf %242, %244 : vector<16x256xf32>
    %246 = arith.addf %219, %245 : vector<16x256xf32>
    %247 = vector.broadcast %40 : f32 to vector<16x256xf32>
    %248 = arith.mulf %247, %232 : vector<16x256xf32>
    %249 = vector.broadcast %67 : f32 to vector<16x256xf32>
    %250 = arith.mulf %249, %234 : vector<16x256xf32>
    %251 = arith.addf %248, %250 : vector<16x256xf32>
    %252 = arith.addf %225, %251 : vector<16x256xf32>
    %c240_i32 = arith.constant 240 : i32
    %253 = tpu.dynamic_rotate %14 by %c240_i32 dim 1 : vector<16x256xf32>, i32 -> vector<16x256xf32>
    %c240_i32_36 = arith.constant 240 : i32
    %254 = tpu.dynamic_rotate %15 by %c240_i32_36 dim 1 : vector<16x256xf32>, i32 -> vector<16x256xf32>
    %c7_37 = arith.constant 7 : index
    %c0_38 = arith.constant 0 : index
    %255 = vector.load %arg2[%c7_37, %c0_38] : memref<9x256xf32, #tpu.memory_space<vmem>>, vector<1x256xf32>
    %256 = vector.shape_cast %255 : vector<1x256xf32> to vector<256xf32>
    %257 = vector.shape_cast %256 : vector<256xf32> to vector<1x256xf32>
    %258 = vector.broadcast %257 : vector<1x256xf32> to vector<16x256xf32>
    %259 = arith.mulf %253, %258 : vector<16x256xf32>
    %260 = vector.broadcast %257 : vector<1x256xf32> to vector<16x256xf32>
    %261 = arith.mulf %254, %260 : vector<16x256xf32>
    %262 = vector.broadcast %23 : f32 to vector<16x256xf32>
    %263 = arith.mulf %262, %259 : vector<16x256xf32>
    %264 = vector.broadcast %50 : f32 to vector<16x256xf32>
    %265 = arith.mulf %264, %261 : vector<16x256xf32>
    %266 = arith.addf %263, %265 : vector<16x256xf32>
    %267 = arith.addf %240, %266 : vector<16x256xf32>
    %268 = vector.broadcast %32 : f32 to vector<16x256xf32>
    %269 = arith.mulf %268, %259 : vector<16x256xf32>
    %270 = vector.broadcast %59 : f32 to vector<16x256xf32>
    %271 = arith.mulf %270, %261 : vector<16x256xf32>
    %272 = arith.addf %269, %271 : vector<16x256xf32>
    %273 = arith.addf %246, %272 : vector<16x256xf32>
    %274 = vector.broadcast %41 : f32 to vector<16x256xf32>
    %275 = arith.mulf %274, %259 : vector<16x256xf32>
    %276 = vector.broadcast %68 : f32 to vector<16x256xf32>
    %277 = arith.mulf %276, %261 : vector<16x256xf32>
    %278 = arith.addf %275, %277 : vector<16x256xf32>
    %279 = arith.addf %252, %278 : vector<16x256xf32>
    %c239_i32 = arith.constant 239 : i32
    %280 = tpu.dynamic_rotate %14 by %c239_i32 dim 1 : vector<16x256xf32>, i32 -> vector<16x256xf32>
    %c239_i32_39 = arith.constant 239 : i32
    %281 = tpu.dynamic_rotate %15 by %c239_i32_39 dim 1 : vector<16x256xf32>, i32 -> vector<16x256xf32>
    %c8_40 = arith.constant 8 : index
    %c0_41 = arith.constant 0 : index
    %282 = vector.load %arg2[%c8_40, %c0_41] : memref<9x256xf32, #tpu.memory_space<vmem>>, vector<1x256xf32>
    %283 = vector.shape_cast %282 : vector<1x256xf32> to vector<256xf32>
    %284 = vector.shape_cast %283 : vector<256xf32> to vector<1x256xf32>
    %285 = vector.broadcast %284 : vector<1x256xf32> to vector<16x256xf32>
    %286 = arith.mulf %280, %285 : vector<16x256xf32>
    %287 = vector.broadcast %284 : vector<1x256xf32> to vector<16x256xf32>
    %288 = arith.mulf %281, %287 : vector<16x256xf32>
    %289 = vector.broadcast %24 : f32 to vector<16x256xf32>
    %290 = arith.mulf %289, %286 : vector<16x256xf32>
    %291 = vector.broadcast %51 : f32 to vector<16x256xf32>
    %292 = arith.mulf %291, %288 : vector<16x256xf32>
    %293 = arith.addf %290, %292 : vector<16x256xf32>
    %294 = arith.addf %267, %293 : vector<16x256xf32>
    %295 = vector.broadcast %33 : f32 to vector<16x256xf32>
    %296 = arith.mulf %295, %286 : vector<16x256xf32>
    %297 = vector.broadcast %60 : f32 to vector<16x256xf32>
    %298 = arith.mulf %297, %288 : vector<16x256xf32>
    %299 = arith.addf %296, %298 : vector<16x256xf32>
    %300 = arith.addf %273, %299 : vector<16x256xf32>
    %301 = vector.broadcast %42 : f32 to vector<16x256xf32>
    %302 = arith.mulf %301, %286 : vector<16x256xf32>
    %303 = vector.broadcast %69 : f32 to vector<16x256xf32>
    %304 = arith.mulf %303, %288 : vector<16x256xf32>
    %305 = arith.addf %302, %304 : vector<16x256xf32>
    %306 = arith.addf %279, %305 : vector<16x256xf32>
    %c1_i32_42 = arith.constant 1 : i32
    %307 = tpu.dynamic_rotate %294 by %c1_i32_42 dim 0 : vector<16x256xf32>, i32 -> vector<16x256xf32>
    %c15_i32_43 = arith.constant 15 : i32
    %308 = tpu.dynamic_rotate %306 by %c15_i32_43 dim 0 : vector<16x256xf32>, i32 -> vector<16x256xf32>
    %309 = tpu.iota {dimensions = array<i32: 1>} : vector<2x8x256xi32>
    %310 = vector.shape_cast %309 : vector<2x8x256xi32> to vector<16x256xi32>
    %c1_i32_44 = arith.constant 1 : i32
    %311 = vector.broadcast %c1_i32_44 : i32 to vector<16x256xi32>
    %312 = arith.cmpi sge, %310, %311 : vector<16x256xi32>
    %cst_45 = arith.constant 0.000000e+00 : f32
    %313 = vector.broadcast %cst_45 : f32 to vector<16x256xf32>
    %314 = arith.select %312, %307, %313 : vector<16x256xi1>, vector<16x256xf32>
    %c6_i32 = arith.constant 6 : i32
    %315 = vector.broadcast %c6_i32 : i32 to vector<16x256xi32>
    %316 = arith.cmpi sle, %310, %315 : vector<16x256xi32>
    %cst_46 = arith.constant 0.000000e+00 : f32
    %317 = vector.broadcast %cst_46 : f32 to vector<16x256xf32>
    %318 = arith.select %316, %308, %317 : vector<16x256xi1>, vector<16x256xf32>
    %319 = arith.addf %300, %314 : vector<16x256xf32>
    %320 = arith.addf %319, %318 : vector<16x256xf32>
    %321 = arith.negf %320 : vector<16x256xf32>
    %322 = math.exp %321 : vector<16x256xf32>
    %cst_47 = arith.constant 1.000000e+00 : f32
    %323 = vector.broadcast %cst_47 : f32 to vector<16x256xf32>
    %324 = arith.addf %323, %322 : vector<16x256xf32>
    %325 = arith.divf %323, %324 : vector<16x256xf32>
    %326 = arith.negf %325 : vector<16x256xf32>
    %327 = math.exp %326 : vector<16x256xf32>
    %cst_48 = arith.constant 1.000000e+00 : f32
    %328 = vector.broadcast %cst_48 : f32 to vector<16x256xf32>
    %329 = arith.addf %328, %327 : vector<16x256xf32>
    %330 = arith.divf %328, %329 : vector<16x256xf32>
    %331 = vector.shape_cast %330 : vector<16x256xf32> to vector<2x8x256xf32>
    %c0_49 = arith.constant 0 : index
    %c0_50 = arith.constant 0 : index
    %c0_51 = arith.constant 0 : index
    %332 = vector.load %arg4[%c0_49, %c0_50, %c0_51] : memref<2x8x256xf32, #tpu.memory_space<vmem>>, vector<2x8x256xf32>
    tpu.vector_store %arg4[%c0_49, %c0_50, %c0_51], %331 {strides = array<i32>} : memref<2x8x256xf32, #tpu.memory_space<vmem>>, vector<2x8x256xf32>,
    return
  }
  func.func @transform_0(%arg0: i32) -> i32 {
    %c0_i32 = arith.constant 0 : i32
    %c0_i32_0 = arith.constant 0 : i32
    return %c0_i32 : i32
  }
  func.func @transform_1(%arg0: i32) -> (i32, i32) {
    %c0_i32 = arith.constant 0 : i32
    %c0_i32_0 = arith.constant 0 : i32
    %c0_i32_1 = arith.constant 0 : i32
    return %c0_i32, %c0_i32_0 : i32, i32
  }
  func.func @transform_2(%arg0: i32) -> (i32, i32, i32, i32) {
    %c0_i32 = arith.constant 0 : i32
    %c0_i32_0 = arith.constant 0 : i32
    %c0_i32_1 = arith.constant 0 : i32
    %c0_i32_2 = arith.constant 0 : i32
    return %arg0, %c0_i32, %c0_i32_0, %c0_i32_1 : i32, i32, i32, i32
  }
  func.func @transform_3(%arg0: i32) -> (i32, i32, i32) {
    %c0_i32 = arith.constant 0 : i32
    %c0_i32_0 = arith.constant 0 : i32
    %c0_i32_1 = arith.constant 0 : i32
    return %arg0, %c0_i32, %c0_i32_0 : i32, i32, i32
  }
}

</mosaic_0001>

<llo_original>
// kernel: tpu_custom_call.1
$region0: #{tpu_custom_call.1}
  #allocation0 [shape = 'u32[]', space=smem, size = 0x4, offset = 0x4, fixed_abs, tag = 'smem constant byte address 0x4 - core index']
  #allocation1 [shape = 'u32[144,128]{1,0:T(1,128)}', space=vmem, size = 0x12000, scoped, tag = 'internal scratch']
  %s0 = inlined_call_operand.hbm [shape: f32[54], index: 0, kind: input, shape index: {}]
  %s1 = inlined_call_operand.hbm [shape: f32[9,256], index: 1, kind: input, shape index: {}]
  %s2 = inlined_call_operand.hbm [shape: f32[2,4,8,256], index: 2, kind: input, shape index: {}]
  %s3 = inlined_call_operand.hbm [shape: f32[2,8,256], index: 3, kind: output, shape index: {}]
  %s4 = sld [smem:[#allocation0]]
  $region34: #{tpu_custom_call.1} parent=0
    _
  %s6 = ssub.s32 1, %s4
  %s7 = scalar_select 0, %s6, %s4
  $region1: #{tpu_custom_call.1} parent=0
    #allocation2 [shape = 'u8[512]{0}', space=smem, size = 0x200, scoped, tag = 'input window, operand 0, single buffered']
    #allocation3 [shape = 's32[1]{0}', space=sflag, size = 0x4, scoped, tag = 'scoped memory for tpu_custom_call.1']
    #allocation4 [shape = 's32[1]{0}', space=sflag, size = 0x4, scoped, tag = 'scoped memory for tpu_custom_call.1']
    #allocation5 [shape = 's32[1]{0}', space=sflag, size = 0x4, scoped, tag = 'scoped memory for tpu_custom_call.1']
    #allocation6 [shape = 'u8[16384]{0}', space=vmem, size = 0x4000, scoped, tag = 'input window, operand 1, single buffered']
    #allocation7 [shape = 'u8[65536]{0}', space=vmem, size = 0x10000, scoped, tag = 'input window, operand 2, single buffered']
    #allocation8 [shape = 's32[1]{0}', space=sflag, size = 0x4, scoped, tag = 'scoped memory for tpu_custom_call.1']
    #allocation9 [shape = 'u8[16384]{0}', space=vmem, size = 0x4000, scoped, tag = 'output window, operand 0, single buffered']
    %8 = vsyncpa [#allocation5], 0
    %9 = vsyncpa [#allocation3], 0
    %10 = vsyncpa [#allocation8], 0
    %11 = vsyncpa [#allocation4], 0
    // Predicated region
    $region2: #{tpu_custom_call.1} parent=1 // pred_check
      _
    $region3: #{tpu_custom_call.1} parent=1 // pred_check_branch
      %13 = sbr.rel (0) target = $region5
    $region4: #{tpu_custom_call.1} parent=1 // pred_region
      %s15 = ssub.s32 16, 16
      %16 = vsyncadd [#allocation5], %s15
      %19 = dma.hbm_to_smem %s0, 16, [#allocation2], [#allocation5]
    $region5: #{tpu_custom_call.1} parent=1 // pred_fallthru
      _
    // Predicated region
    $region6: #{tpu_custom_call.1} parent=1 // pred_check
      _
    $region7: #{tpu_custom_call.1} parent=1 // pred_check_branch
      %21 = sbr.rel (0) target = $region9
    $region8: #{tpu_custom_call.1} parent=1 // pred_region
      %s23 = ssub.s32 512, 512
      %24 = vsyncadd [#allocation3], %s23
      %s25 = sshll.u32 [#allocation6], 4
      %s26 = int_to_ptr.vmem [resolvable:$true] %s25
      %31 = dma.hbm_to_vmem [thread:$0]  %s1, 512, %s26, [#allocation3], 256, 256, 16
    $region9: #{tpu_custom_call.1} parent=1 // pred_fallthru
      _
    // Predicated region
    $region10: #{tpu_custom_call.1} parent=1 // pred_check
      _
    $region11: #{tpu_custom_call.1} parent=1 // pred_check_branch
      %33 = sbr.rel (0) target = $region13
    $region12: #{tpu_custom_call.1} parent=1 // pred_region
      %s35 = ssub.s32 2048, 2048
      %36 = vsyncadd [#allocation8], %s35
      %s37 = sshll.u32 [#allocation7], 4
      %s38 = int_to_ptr.vmem [resolvable:$true] %s37
      %43 = dma.hbm_to_vmem [thread:$0]  %s2, 2048, %s38, [#allocation8], 256, 256, 16
    $region13: #{tpu_custom_call.1} parent=1 // pred_fallthru
      _
    // Predicated region
    $region14: #{tpu_custom_call.1} parent=1 // pred_check
      _
    $region15: #{tpu_custom_call.1} parent=1 // pred_check_branch
      %45 = sbr.rel (0) target = $region17
    $region16: #{tpu_custom_call.1} parent=1 // pred_region
      %46 = dma.done [#allocation5], 16
    $region17: #{tpu_custom_call.1} parent=1 // pred_fallthru
      _
    // Predicated region
    $region18: #{tpu_custom_call.1} parent=1 // pred_check
      _
    $region19: #{tpu_custom_call.1} parent=1 // pred_check_branch
      %48 = sbr.rel (0) target = $region21
    $region20: #{tpu_custom_call.1} parent=1 // pred_region
      %49 = dma.done [#allocation3], 512
    $region21: #{tpu_custom_call.1} parent=1 // pred_fallthru
      _
    // Predicated region
    $region22: #{tpu_custom_call.1} parent=1 // pred_check
      _
    $region23: #{tpu_custom_call.1} parent=1 // pred_check_branch
      %51 = sbr.rel (0) target = $region25
    $region24: #{tpu_custom_call.1} parent=1 // pred_region
      %52 = dma.done [#allocation8], 2048
    $region25: #{tpu_custom_call.1} parent=1 // pred_fallthru
      _
    %53 = sfence
    %v54 = vld [vmem:[#allocation7] sm:$0xff]
    %v55 = vld [vmem:[#allocation7 + $0x8] sm:$0xff]
    %v56 = vld [vmem:[#allocation7 + $0x40] sm:$0xff]
    %v57 = vld [vmem:[#allocation7 + $0x48] sm:$0xff]
    %s58 = scalar_lea.vmem [#allocation7], 16
    %v59 = vld [vmem:[%s58] sm:$0xff]
    %v60 = vld [vmem:[%s58 + $0x8] sm:$0xff]
    %v61 = vld [vmem:[%s58 + $0x40] sm:$0xff]
    %v62 = vld [vmem:[%s58 + $0x48] sm:$0xff]
    %v63 = vadd.f32 %v54, %v59
    %v64 = vadd.f32 %v55, %v60
    %v65 = vadd.f32 %v56, %v61
    %v66 = vadd.f32 %v57, %v62
    %v67 = vmax.f32 %v54, %v59
    %v68 = vmax.f32 %v55, %v60
    %v69 = vmax.f32 %v56, %v61
    %v70 = vmax.f32 %v57, %v62
    %s71 = scalar_lea.vmem [#allocation7], 32
    %v72 = vld [vmem:[%s71] sm:$0xff]
    %v73 = vld [vmem:[%s71 + $0x8] sm:$0xff]
    %v74 = vld [vmem:[%s71 + $0x40] sm:$0xff]
    %v75 = vld [vmem:[%s71 + $0x48] sm:$0xff]
    %v76 = vadd.f32 %v63, %v72
    %v77 = vadd.f32 %v64, %v73
    %v78 = vadd.f32 %v65, %v74
    %v79 = vadd.f32 %v66, %v75
    %v80 = vmax.f32 %v67, %v72
    %v81 = vmax.f32 %v68, %v73
    %v82 = vmax.f32 %v69, %v74
    %v83 = vmax.f32 %v70, %v75
    %s84 = scalar_lea.vmem [#allocation7], 48
    %v85 = vld [vmem:[%s84] sm:$0xff]
    %v86 = vld [vmem:[%s84 + $0x8] sm:$0xff]
    %v87 = vld [vmem:[%s84 + $0x40] sm:$0xff]
    %v88 = vld [vmem:[%s84 + $0x48] sm:$0xff]
    %v89 = vadd.f32 %v76, %v85
    %v90 = vadd.f32 %v77, %v86
    %v91 = vadd.f32 %v78, %v87
    %v92 = vadd.f32 %v79, %v88
    %v93 = vmax.f32 %v80, %v85
    %v94 = vmax.f32 %v81, %v86
    %v95 = vmax.f32 %v82, %v87
    %v96 = vmax.f32 %v83, %v88
    %s97 = sld [smem:[#allocation2]]
    %s98 = sld [smem:[#allocation2 + $0x1]]
    %s99 = sld [smem:[#allocation2 + $0x2]]
    %s100 = sld [smem:[#allocation2 + $0x3]]
    %s101 = sld [smem:[#allocation2 + $0x4]]
    %s102 = sld [smem:[#allocation2 + $0x5]]
    %s103 = sld [smem:[#allocation2 + $0x6]]
    %s104 = sld [smem:[#allocation2 + $0x7]]
    %s105 = sld [smem:[#allocation2 + $0x8]]
    %s106 = sld [smem:[#allocation2 + $0x9]]
    %s107 = sld [smem:[#allocation2 + $0xa]]
    %s108 = sld [smem:[#allocation2 + $0xb]]
    %s109 = sld [smem:[#allocation2 + $0xc]]
    %s110 = sld [smem:[#allocation2 + $0xd]]
    %s111 = sld [smem:[#allocation2 + $0xe]]
    %s112 = sld [smem:[#allocation2 + $0xf]]
    %s113 = sld [smem:[#allocation2 + $0x10]]
    %s114 = sld [smem:[#allocation2 + $0x11]]
    %s115 = sld [smem:[#allocation2 + $0x12]]
    %s116 = sld [smem:[#allocation2 + $0x13]]
    %s117 = sld [smem:[#allocation2 + $0x14]]
    %s118 = sld [smem:[#allocation2 + $0x15]]
    %s119 = sld [smem:[#allocation2 + $0x16]]
    %s120 = sld [smem:[#allocation2 + $0x17]]
    %s121 = sld [smem:[#allocation2 + $0x18]]
    %s122 = sld [smem:[#allocation2 + $0x19]]
    %s123 = sld [smem:[#allocation2 + $0x1a]]
    %s124 = sld [smem:[#allocation2 + $0x1b]]
    %s125 = sld [smem:[#allocation2 + $0x1c]]
    %s126 = sld [smem:[#allocation2 + $0x1d]]
    %s127 = sld [smem:[#allocation2 + $0x1e]]
    %s128 = sld [smem:[#allocation2 + $0x1f]]
    %s129 = sld [smem:[#allocation2 + $0x20]]
    %s130 = sld [smem:[#allocation2 + $0x21]]
    %s131 = sld [smem:[#allocation2 + $0x22]]
    %s132 = sld [smem:[#allocation2 + $0x23]]
    %s133 = sld [smem:[#allocation2 + $0x24]]
    %s134 = sld [smem:[#allocation2 + $0x25]]
    %s135 = sld [smem:[#allocation2 + $0x26]]
    %s136 = sld [smem:[#allocation2 + $0x27]]
    %s137 = sld [smem:[#allocation2 + $0x28]]
    %s138 = sld [smem:[#allocation2 + $0x29]]
    %s139 = sld [smem:[#allocation2 + $0x2a]]
    %s140 = sld [smem:[#allocation2 + $0x2b]]
    %s141 = sld [smem:[#allocation2 + $0x2c]]
    %s142 = sld [smem:[#allocation2 + $0x2d]]
    %s143 = sld [smem:[#allocation2 + $0x2e]]
    %s144 = sld [smem:[#allocation2 + $0x2f]]
    %s145 = sld [smem:[#allocation2 + $0x30]]
    %s146 = sld [smem:[#allocation2 + $0x31]]
    %s147 = sld [smem:[#allocation2 + $0x32]]
    %s148 = sld [smem:[#allocation2 + $0x33]]
    %s149 = sld [smem:[#allocation2 + $0x34]]
    %s150 = sld [smem:[#allocation2 + $0x35]]
    %151 = vrot.lane.b32.xlu0 %v89, 17
    %v152 = vpop.permute.xlu0 %151
    %153 = vrot.lane.b32.xlu0 %v91, 17
    %v154 = vpop.permute.xlu0 %153
    %155 = vrot.lane.b32.xlu0 %v90, 17
    %v156 = vpop.permute.xlu0 %155
    %157 = vrot.lane.b32.xlu0 %v92, 17
    %v158 = vpop.permute.xlu0 %157
    %v159 = vlaneseq
    %v160 = vand.u32 %v159, 127
    %vm161 = vcmp.lt.s32.totalorder %v160, 17
    %v162 = vsel %vm161, %v152, %v156
    %v163 = vsel %vm161, %v154, %v158
    %v164 = vsel %vm161, %v156, %v152
    %v165 = vsel %vm161, %v158, %v154
    %166 = vrot.lane.b32.xlu0 %v93, 17
    %v167 = vpop.permute.xlu0 %166
    %168 = vrot.lane.b32.xlu0 %v95, 17
    %v169 = vpop.permute.xlu0 %168
    %170 = vrot.lane.b32.xlu0 %v94, 17
    %v171 = vpop.permute.xlu0 %170
    %172 = vrot.lane.b32.xlu0 %v96, 17
    %v173 = vpop.permute.xlu0 %172
    %v174 = vsel %vm161, %v167, %v171
    %v175 = vsel %vm161, %v169, %v173
    %v176 = vsel %vm161, %v171, %v167
    %v177 = vsel %vm161, %v173, %v169
    %v178 = vld [vmem:[#allocation6] ss:$8 sm:$0x3]
    %v180 = vlaneseq
    %v181 = vshrl.u32 %v180, 7
    %v182 = vsub.s32 0, %v181
    %v183 = vrot.slane %v178, %v182
    %v184 = vlaneseq
    %v185 = vshrl.u32 %v184, 7
    %v186 = vsub.s32 1, %v185
    %v187 = vrot.slane %v178, %v186
    %v190 = vmul.f32 %v164, %v183
    %v191 = vmul.f32 %v162, %v187
    %v192 = vmul.f32 %v165, %v183
    %v193 = vmul.f32 %v163, %v187
    %v194 = vmul.f32 %v176, %v183
    %v195 = vmul.f32 %v174, %v187
    %v196 = vmul.f32 %v177, %v183
    %v197 = vmul.f32 %v175, %v187
    %v198 = vstv %s97
    %v199 = vmul.f32 %v198, %v190
    %v200 = vmul.f32 %v198, %v191
    %v201 = vmul.f32 %v198, %v192
    %v202 = vmul.f32 %v198, %v193
    %v203 = vstv %s124
    %v204 = vmul.f32 %v203, %v194
    %v205 = vmul.f32 %v203, %v195
    %v206 = vmul.f32 %v203, %v196
    %v207 = vmul.f32 %v203, %v197
    %v208 = vadd.f32 %v199, %v204
    %v209 = vadd.f32 %v200, %v205
    %v210 = vadd.f32 %v201, %v206
    %v211 = vadd.f32 %v202, %v207
    %v212 = vadd.f32 %v208, 0.0
    %v213 = vadd.f32 %v209, 0.0
    %v214 = vadd.f32 %v210, 0.0
    %v215 = vadd.f32 %v211, 0.0
    %v216 = vstv %s106
    %v217 = vmul.f32 %v216, %v190
    %v218 = vmul.f32 %v216, %v191
    %v219 = vmul.f32 %v216, %v192
    %v220 = vmul.f32 %v216, %v193
    %v221 = vstv %s133
    %v222 = vmul.f32 %v221, %v194
    %v223 = vmul.f32 %v221, %v195
    %v224 = vmul.f32 %v221, %v196
    %v225 = vmul.f32 %v221, %v197
    %v226 = vadd.f32 %v217, %v222
    %v227 = vadd.f32 %v218, %v223
    %v228 = vadd.f32 %v219, %v224
    %v229 = vadd.f32 %v220, %v225
    %v230 = vadd.f32 %v226, 0.0
    %v231 = vadd.f32 %v227, 0.0
    %v232 = vadd.f32 %v228, 0.0
    %v233 = vadd.f32 %v229, 0.0
    %v234 = vstv %s115
    %v235 = vmul.f32 %v234, %v190
    %v236 = vmul.f32 %v234, %v191
    %v237 = vmul.f32 %v234, %v192
    %v238 = vmul.f32 %v234, %v193
    %v239 = vstv %s142
    %v240 = vmul.f32 %v239, %v194
    %v241 = vmul.f32 %v239, %v195
    %v242 = vmul.f32 %v239, %v196
    %v243 = vmul.f32 %v239, %v197
    %v244 = vadd.f32 %v235, %v240
    %v245 = vadd.f32 %v236, %v241
    %v246 = vadd.f32 %v237, %v242
    %v247 = vadd.f32 %v238, %v243
    %v248 = vadd.f32 %v244, 0.0
    %v249 = vadd.f32 %v245, 0.0
    %v250 = vadd.f32 %v246, 0.0
    %v251 = vadd.f32 %v247, 0.0
    %252 = vrot.lane.b32.xlu0 %v89, 16
    %v253 = vpop.permute.xlu0 %252
    %254 = vrot.lane.b32.xlu0 %v91, 16
    %v255 = vpop.permute.xlu0 %254
    %256 = vrot.lane.b32.xlu0 %v90, 16
    %v257 = vpop.permute.xlu0 %256
    %258 = vrot.lane.b32.xlu0 %v92, 16
    %v259 = vpop.permute.xlu0 %258
    %vm260 = vcmp.lt.s32.totalorder %v160, 16
    %v261 = vsel %vm260, %v253, %v257
    %v262 = vsel %vm260, %v255, %v259
    %v263 = vsel %vm260, %v257, %v253
    %v264 = vsel %vm260, %v259, %v255
    %265 = vrot.lane.b32.xlu0 %v93, 16
    %v266 = vpop.permute.xlu0 %265
    %267 = vrot.lane.b32.xlu0 %v95, 16
    %v268 = vpop.permute.xlu0 %267
    %269 = vrot.lane.b32.xlu0 %v94, 16
    %v270 = vpop.permute.xlu0 %269
    %271 = vrot.lane.b32.xlu0 %v96, 16
    %v272 = vpop.permute.xlu0 %271
    %v273 = vsel %vm260, %v266, %v270
    %v274 = vsel %vm260, %v268, %v272
    %v275 = vsel %vm260, %v270, %v266
    %v276 = vsel %vm260, %v272, %v268
    %s277 = scalar_lea.vmem [#allocation6], 1
    %v278 = vld [vmem:[%s277] ss:$8 sm:$0x3]
    %v280 = vlaneseq
    %v281 = vshrl.u32 %v280, 7
    %v282 = vsub.s32 0, %v281
    %v283 = vrot.slane %v278, %v282
    %v284 = vlaneseq
    %v285 = vshrl.u32 %v284, 7
    %v286 = vsub.s32 1, %v285
    %v287 = vrot.slane %v278, %v286
    %v290 = vmul.f32 %v263, %v283
    %v291 = vmul.f32 %v261, %v287
    %v292 = vmul.f32 %v264, %v283
    %v293 = vmul.f32 %v262, %v287
    %v294 = vmul.f32 %v275, %v283
    %v295 = vmul.f32 %v273, %v287
    %v296 = vmul.f32 %v276, %v283
    %v297 = vmul.f32 %v274, %v287
    %v298 = vstv %s98
    %v299 = vmul.f32 %v298, %v290
    %v300 = vmul.f32 %v298, %v291
    %v301 = vmul.f32 %v298, %v292
    %v302 = vmul.f32 %v298, %v293
    %v303 = vstv %s125
    %v304 = vmul.f32 %v303, %v294
    %v305 = vmul.f32 %v303, %v295
    %v306 = vmul.f32 %v303, %v296
    %v307 = vmul.f32 %v303, %v297
    %v308 = vadd.f32 %v299, %v304
    %v309 = vadd.f32 %v300, %v305
    %v310 = vadd.f32 %v301, %v306
    %v311 = vadd.f32 %v302, %v307
    %v312 = vadd.f32 %v212, %v308
    %v313 = vadd.f32 %v213, %v309
    %v314 = vadd.f32 %v214, %v310
    %v315 = vadd.f32 %v215, %v311
    %v316 = vstv %s107
    %v317 = vmul.f32 %v316, %v290
    %v318 = vmul.f32 %v316, %v291
    %v319 = vmul.f32 %v316, %v292
    %v320 = vmul.f32 %v316, %v293
    %v321 = vstv %s134
    %v322 = vmul.f32 %v321, %v294
    %v323 = vmul.f32 %v321, %v295
    %v324 = vmul.f32 %v321, %v296
    %v325 = vmul.f32 %v321, %v297
    %v326 = vadd.f32 %v317, %v322
    %v327 = vadd.f32 %v318, %v323
    %v328 = vadd.f32 %v319, %v324
    %v329 = vadd.f32 %v320, %v325
    %v330 = vadd.f32 %v230, %v326
    %v331 = vadd.f32 %v231, %v327
    %v332 = vadd.f32 %v232, %v328
    %v333 = vadd.f32 %v233, %v329
    %v334 = vstv %s116
    %v335 = vmul.f32 %v334, %v290
    %v336 = vmul.f32 %v334, %v291
    %v337 = vmul.f32 %v334, %v292
    %v338 = vmul.f32 %v334, %v293
    %v339 = vstv %s143
    %v340 = vmul.f32 %v339, %v294
    %v341 = vmul.f32 %v339, %v295
    %v342 = vmul.f32 %v339, %v296
    %v343 = vmul.f32 %v339, %v297
    %v344 = vadd.f32 %v335, %v340
    %v345 = vadd.f32 %v336, %v341
    %v346 = vadd.f32 %v337, %v342
    %v347 = vadd.f32 %v338, %v343
    %v348 = vadd.f32 %v248, %v344
    %v349 = vadd.f32 %v249, %v345
    %v350 = vadd.f32 %v250, %v346
    %v351 = vadd.f32 %v251, %v347
    %352 = vrot.lane.b32.xlu0 %v89, 15
    %v353 = vpop.permute.xlu0 %352
    %354 = vrot.lane.b32.xlu0 %v91, 15
    %v355 = vpop.permute.xlu0 %354
    %356 = vrot.lane.b32.xlu0 %v90, 15
    %v357 = vpop.permute.xlu0 %356
    %358 = vrot.lane.b32.xlu0 %v92, 15
    %v359 = vpop.permute.xlu0 %358
    %vm360 = vcmp.lt.s32.totalorder %v160, 15
    %v361 = vsel %vm360, %v353, %v357
    %v362 = vsel %vm360, %v355, %v359
    %v363 = vsel %vm360, %v357, %v353
    %v364 = vsel %vm360, %v359, %v355
    %365 = vrot.lane.b32.xlu0 %v93, 15
    %v366 = vpop.permute.xlu0 %365
    %367 = vrot.lane.b32.xlu0 %v95, 15
    %v368 = vpop.permute.xlu0 %367
    %369 = vrot.lane.b32.xlu0 %v94, 15
    %v370 = vpop.permute.xlu0 %369
    %371 = vrot.lane.b32.xlu0 %v96, 15
    %v372 = vpop.permute.xlu0 %371
    %v373 = vsel %vm360, %v366, %v370
    %v374 = vsel %vm360, %v368, %v372
    %v375 = vsel %vm360, %v370, %v366
    %v376 = vsel %vm360, %v372, %v368
    %s377 = scalar_lea.vmem [#allocation6], 2
    %v378 = vld [vmem:[%s377] ss:$8 sm:$0x3]
    %v380 = vlaneseq
    %v381 = vshrl.u32 %v380, 7
    %v382 = vsub.s32 0, %v381
    %v383 = vrot.slane %v378, %v382
    %v384 = vlaneseq
    %v385 = vshrl.u32 %v384, 7
    %v386 = vsub.s32 1, %v385
    %v387 = vrot.slane %v378, %v386
    %v390 = vmul.f32 %v363, %v383
    %v391 = vmul.f32 %v361, %v387
    %v392 = vmul.f32 %v364, %v383
    %v393 = vmul.f32 %v362, %v387
    %v394 = vmul.f32 %v375, %v383
    %v395 = vmul.f32 %v373, %v387
    %v396 = vmul.f32 %v376, %v383
    %v397 = vmul.f32 %v374, %v387
    %v398 = vstv %s99
    %v399 = vmul.f32 %v398, %v390
    %v400 = vmul.f32 %v398, %v391
    %v401 = vmul.f32 %v398, %v392
    %v402 = vmul.f32 %v398, %v393
    %v403 = vstv %s126
    %v404 = vmul.f32 %v403, %v394
    %v405 = vmul.f32 %v403, %v395
    %v406 = vmul.f32 %v403, %v396
    %v407 = vmul.f32 %v403, %v397
    %v408 = vadd.f32 %v399, %v404
    %v409 = vadd.f32 %v400, %v405
    %v410 = vadd.f32 %v401, %v406
    %v411 = vadd.f32 %v402, %v407
    %v412 = vadd.f32 %v312, %v408
    %v413 = vadd.f32 %v313, %v409
    %v414 = vadd.f32 %v314, %v410
    %v415 = vadd.f32 %v315, %v411
    %v416 = vstv %s108
    %v417 = vmul.f32 %v416, %v390
    %v418 = vmul.f32 %v416, %v391
    %v419 = vmul.f32 %v416, %v392
    %v420 = vmul.f32 %v416, %v393
    %v421 = vstv %s135
    %v422 = vmul.f32 %v421, %v394
    %v423 = vmul.f32 %v421, %v395
    %v424 = vmul.f32 %v421, %v396
    %v425 = vmul.f32 %v421, %v397
    %v426 = vadd.f32 %v417, %v422
    %v427 = vadd.f32 %v418, %v423
    %v428 = vadd.f32 %v419, %v424
    %v429 = vadd.f32 %v420, %v425
    %v430 = vadd.f32 %v330, %v426
    %v431 = vadd.f32 %v331, %v427
    %v432 = vadd.f32 %v332, %v428
    %v433 = vadd.f32 %v333, %v429
    %v434 = vstv %s117
    %v435 = vmul.f32 %v434, %v390
    %v436 = vmul.f32 %v434, %v391
    %v437 = vmul.f32 %v434, %v392
    %v438 = vmul.f32 %v434, %v393
    %v439 = vstv %s144
    %v440 = vmul.f32 %v439, %v394
    %v441 = vmul.f32 %v439, %v395
    %v442 = vmul.f32 %v439, %v396
    %v443 = vmul.f32 %v439, %v397
    %v444 = vadd.f32 %v435, %v440
    %v445 = vadd.f32 %v436, %v441
    %v446 = vadd.f32 %v437, %v442
    %v447 = vadd.f32 %v438, %v443
    %v448 = vadd.f32 %v348, %v444
    %v449 = vadd.f32 %v349, %v445
    %v450 = vadd.f32 %v350, %v446
    %v451 = vadd.f32 %v351, %v447
    %452 = vrot.lane.b32.xlu0 %v89, 1
    %v453 = vpop.permute.xlu0 %452
    %454 = vrot.lane.b32.xlu0 %v91, 1
    %v455 = vpop.permute.xlu0 %454
    %456 = vrot.lane.b32.xlu0 %v90, 1
    %v457 = vpop.permute.xlu0 %456
    %458 = vrot.lane.b32.xlu0 %v92, 1
    %v459 = vpop.permute.xlu0 %458
    %vm460 = vcmp.lt.s32.totalorder %v160, 1
    %v461 = vsel %vm460, %v453, %v457
    %v462 = vsel %vm460, %v455, %v459
    %v463 = vsel %vm460, %v457, %v453
    %v464 = vsel %vm460, %v459, %v455
    %465 = vrot.lane.b32.xlu0 %v93, 1
    %v466 = vpop.permute.xlu0 %465
    %467 = vrot.lane.b32.xlu0 %v95, 1
    %v468 = vpop.permute.xlu0 %467
    %469 = vrot.lane.b32.xlu0 %v94, 1
    %v470 = vpop.permute.xlu0 %469
    %471 = vrot.lane.b32.xlu0 %v96, 1
    %v472 = vpop.permute.xlu0 %471
    %v473 = vsel %vm460, %v466, %v470
    %v474 = vsel %vm460, %v468, %v472
    %v475 = vsel %vm460, %v470, %v466
    %v476 = vsel %vm460, %v472, %v468
    %s477 = scalar_lea.vmem [#allocation6], 3
    %v478 = vld [vmem:[%s477] ss:$8 sm:$0x3]
    %v480 = vlaneseq
    %v481 = vshrl.u32 %v480, 7
    %v482 = vsub.s32 0, %v481
    %v483 = vrot.slane %v478, %v482
    %v484 = vlaneseq
    %v485 = vshrl.u32 %v484, 7
    %v486 = vsub.s32 1, %v485
    %v487 = vrot.slane %v478, %v486
    %v490 = vmul.f32 %v463, %v483
    %v491 = vmul.f32 %v461, %v487
    %v492 = vmul.f32 %v464, %v483
    %v493 = vmul.f32 %v462, %v487
    %v494 = vmul.f32 %v475, %v483
    %v495 = vmul.f32 %v473, %v487
    %v496 = vmul.f32 %v476, %v483
    %v497 = vmul.f32 %v474, %v487
    %v498 = vstv %s100
    %v499 = vmul.f32 %v498, %v490
    %v500 = vmul.f32 %v498, %v491
    %v501 = vmul.f32 %v498, %v492
    %v502 = vmul.f32 %v498, %v493
    %v503 = vstv %s127
    %v504 = vmul.f32 %v503, %v494
    %v505 = vmul.f32 %v503, %v495
    %v506 = vmul.f32 %v503, %v496
    %v507 = vmul.f32 %v503, %v497
    %v508 = vadd.f32 %v499, %v504
    %v509 = vadd.f32 %v500, %v505
    %v510 = vadd.f32 %v501, %v506
    %v511 = vadd.f32 %v502, %v507
    %v512 = vadd.f32 %v412, %v508
    %v513 = vadd.f32 %v413, %v509
    %v514 = vadd.f32 %v414, %v510
    %v515 = vadd.f32 %v415, %v511
    %v516 = vstv %s109
    %v517 = vmul.f32 %v516, %v490
    %v518 = vmul.f32 %v516, %v491
    %v519 = vmul.f32 %v516, %v492
    %v520 = vmul.f32 %v516, %v493
    %v521 = vstv %s136
    %v522 = vmul.f32 %v521, %v494
    %v523 = vmul.f32 %v521, %v495
    %v524 = vmul.f32 %v521, %v496
    %v525 = vmul.f32 %v521, %v497
    %v526 = vadd.f32 %v517, %v522
    %v527 = vadd.f32 %v518, %v523
    %v528 = vadd.f32 %v519, %v524
    %v529 = vadd.f32 %v520, %v525
    %v530 = vadd.f32 %v430, %v526
    %v531 = vadd.f32 %v431, %v527
    %v532 = vadd.f32 %v432, %v528
    %v533 = vadd.f32 %v433, %v529
    %v534 = vstv %s118
    %v535 = vmul.f32 %v534, %v490
    %v536 = vmul.f32 %v534, %v491
    %v537 = vmul.f32 %v534, %v492
    %v538 = vmul.f32 %v534, %v493
    %v539 = vstv %s145
    %v540 = vmul.f32 %v539, %v494
    %v541 = vmul.f32 %v539, %v495
    %v542 = vmul.f32 %v539, %v496
    %v543 = vmul.f32 %v539, %v497
    %v544 = vadd.f32 %v535, %v540
    %v545 = vadd.f32 %v536, %v541
    %v546 = vadd.f32 %v537, %v542
    %v547 = vadd.f32 %v538, %v543
    %v548 = vadd.f32 %v448, %v544
    %v549 = vadd.f32 %v449, %v545
    %v550 = vadd.f32 %v450, %v546
    %v551 = vadd.f32 %v451, %v547
    %v552 = vstv %s101
    %v553 = vmul.f32 %v552, %v89
    %v554 = vmul.f32 %v552, %v90
    %v555 = vmul.f32 %v552, %v91
    %v556 = vmul.f32 %v552, %v92
    %v557 = vstv %s128
    %v558 = vmul.f32 %v557, %v93
    %v559 = vmul.f32 %v557, %v94
    %v560 = vmul.f32 %v557, %v95
    %v561 = vmul.f32 %v557, %v96
    %v562 = vadd.f32 %v553, %v558
    %v563 = vadd.f32 %v554, %v559
    %v564 = vadd.f32 %v555, %v560
    %v565 = vadd.f32 %v556, %v561
    %v566 = vadd.f32 %v512, %v562
    %v567 = vadd.f32 %v513, %v563
    %v568 = vadd.f32 %v514, %v564
    %v569 = vadd.f32 %v515, %v565
    %v570 = vstv %s110
    %v571 = vmul.f32 %v570, %v89
    %v572 = vmul.f32 %v570, %v90
    %v573 = vmul.f32 %v570, %v91
    %v574 = vmul.f32 %v570, %v92
    %v575 = vstv %s137
    %v576 = vmul.f32 %v575, %v93
    %v577 = vmul.f32 %v575, %v94
    %v578 = vmul.f32 %v575, %v95
    %v579 = vmul.f32 %v575, %v96
    %v580 = vadd.f32 %v571, %v576
    %v581 = vadd.f32 %v572, %v577
    %v582 = vadd.f32 %v573, %v578
    %v583 = vadd.f32 %v574, %v579
    %v584 = vadd.f32 %v530, %v580
    %v585 = vadd.f32 %v531, %v581
    %v586 = vadd.f32 %v532, %v582
    %v587 = vadd.f32 %v533, %v583
    %v588 = vstv %s119
    %v589 = vmul.f32 %v588, %v89
    %v590 = vmul.f32 %v588, %v90
    %v591 = vmul.f32 %v588, %v91
    %v592 = vmul.f32 %v588, %v92
    %v593 = vstv %s146
    %v594 = vmul.f32 %v593, %v93
    %v595 = vmul.f32 %v593, %v94
    %v596 = vmul.f32 %v593, %v95
    %v597 = vmul.f32 %v593, %v96
    %v598 = vadd.f32 %v589, %v594
    %v599 = vadd.f32 %v590, %v595
    %v600 = vadd.f32 %v591, %v596
    %v601 = vadd.f32 %v592, %v597
    %v602 = vadd.f32 %v548, %v598
    %v603 = vadd.f32 %v549, %v599
    %v604 = vadd.f32 %v550, %v600
    %v605 = vadd.f32 %v551, %v601
    %606 = vrot.lane.b32.xlu0 %v89, 127
    %v607 = vpop.permute.xlu0 %606
    %608 = vrot.lane.b32.xlu0 %v91, 127
    %v609 = vpop.permute.xlu0 %608
    %610 = vrot.lane.b32.xlu0 %v90, 127
    %v611 = vpop.permute.xlu0 %610
    %612 = vrot.lane.b32.xlu0 %v92, 127
    %v613 = vpop.permute.xlu0 %612
    %vm614 = vcmp.lt.s32.totalorder %v160, 127
    %v615 = vsel %vm614, %v607, %v611
    %v616 = vsel %vm614, %v609, %v613
    %v617 = vsel %vm614, %v611, %v607
    %v618 = vsel %vm614, %v613, %v609
    %619 = vrot.lane.b32.xlu0 %v93, 127
    %v620 = vpop.permute.xlu0 %619
    %621 = vrot.lane.b32.xlu0 %v95, 127
    %v622 = vpop.permute.xlu0 %621
    %623 = vrot.lane.b32.xlu0 %v94, 127
    %v624 = vpop.permute.xlu0 %623
    %625 = vrot.lane.b32.xlu0 %v96, 127
    %v626 = vpop.permute.xlu0 %625
    %v627 = vsel %vm614, %v620, %v624
    %v628 = vsel %vm614, %v622, %v626
    %v629 = vsel %vm614, %v624, %v620
    %v630 = vsel %vm614, %v626, %v622
    %s631 = scalar_lea.vmem [#allocation6], 5
    %v632 = vld [vmem:[%s631] ss:$8 sm:$0x3]
    %v634 = vlaneseq
    %v635 = vshrl.u32 %v634, 7
    %v636 = vsub.s32 0, %v635
    %v637 = vrot.slane %v632, %v636
    %v638 = vlaneseq
    %v639 = vshrl.u32 %v638, 7
    %v640 = vsub.s32 1, %v639
    %v641 = vrot.slane %v632, %v640
    %v644 = vmul.f32 %v615, %v637
    %v645 = vmul.f32 %v617, %v641
    %v646 = vmul.f32 %v616, %v637
    %v647 = vmul.f32 %v618, %v641
    %v648 = vmul.f32 %v627, %v637
    %v649 = vmul.f32 %v629, %v641
    %v650 = vmul.f32 %v628, %v637
    %v651 = vmul.f32 %v630, %v641
    %v652 = vstv %s102
    %v653 = vmul.f32 %v652, %v644
    %v654 = vmul.f32 %v652, %v645
    %v655 = vmul.f32 %v652, %v646
    %v656 = vmul.f32 %v652, %v647
    %v657 = vstv %s129
    %v658 = vmul.f32 %v657, %v648
    %v659 = vmul.f32 %v657, %v649
    %v660 = vmul.f32 %v657, %v650
    %v661 = vmul.f32 %v657, %v651
    %v662 = vadd.f32 %v653, %v658
    %v663 = vadd.f32 %v654, %v659
    %v664 = vadd.f32 %v655, %v660
    %v665 = vadd.f32 %v656, %v661
    %v666 = vadd.f32 %v566, %v662
    %v667 = vadd.f32 %v567, %v663
    %v668 = vadd.f32 %v568, %v664
    %v669 = vadd.f32 %v569, %v665
    %v670 = vstv %s111
    %v671 = vmul.f32 %v670, %v644
    %v672 = vmul.f32 %v670, %v645
    %v673 = vmul.f32 %v670, %v646
    %v674 = vmul.f32 %v670, %v647
    %v675 = vstv %s138
    %v676 = vmul.f32 %v675, %v648
    %v677 = vmul.f32 %v675, %v649
    %v678 = vmul.f32 %v675, %v650
    %v679 = vmul.f32 %v675, %v651
    %v680 = vadd.f32 %v671, %v676
    %v681 = vadd.f32 %v672, %v677
    %v682 = vadd.f32 %v673, %v678
    %v683 = vadd.f32 %v674, %v679
    %v684 = vadd.f32 %v584, %v680
    %v685 = vadd.f32 %v585, %v681
    %v686 = vadd.f32 %v586, %v682
    %v687 = vadd.f32 %v587, %v683
    %v688 = vstv %s120
    %v689 = vmul.f32 %v688, %v644
    %v690 = vmul.f32 %v688, %v645
    %v691 = vmul.f32 %v688, %v646
    %v692 = vmul.f32 %v688, %v647
    %v693 = vstv %s147
    %v694 = vmul.f32 %v693, %v648
    %v695 = vmul.f32 %v693, %v649
    %v696 = vmul.f32 %v693, %v650
    %v697 = vmul.f32 %v693, %v651
    %v698 = vadd.f32 %v689, %v694
    %v699 = vadd.f32 %v690, %v695
    %v700 = vadd.f32 %v691, %v696
    %v701 = vadd.f32 %v692, %v697
    %v702 = vadd.f32 %v602, %v698
    %v703 = vadd.f32 %v603, %v699
    %v704 = vadd.f32 %v604, %v700
    %v705 = vadd.f32 %v605, %v701
    %706 = vrot.lane.b32.xlu0 %v89, 113
    %v707 = vpop.permute.xlu0 %706
    %708 = vrot.lane.b32.xlu0 %v91, 113
    %v709 = vpop.permute.xlu0 %708
    %710 = vrot.lane.b32.xlu0 %v90, 113
    %v711 = vpop.permute.xlu0 %710
    %712 = vrot.lane.b32.xlu0 %v92, 113
    %v713 = vpop.permute.xlu0 %712
    %vm714 = vcmp.lt.s32.totalorder %v160, 113
    %v715 = vsel %vm714, %v707, %v711
    %v716 = vsel %vm714, %v709, %v713
    %v717 = vsel %vm714, %v711, %v707
    %v718 = vsel %vm714, %v713, %v709
    %719 = vrot.lane.b32.xlu0 %v93, 113
    %v720 = vpop.permute.xlu0 %719
    %721 = vrot.lane.b32.xlu0 %v95, 113
    %v722 = vpop.permute.xlu0 %721
    %723 = vrot.lane.b32.xlu0 %v94, 113
    %v724 = vpop.permute.xlu0 %723
    %725 = vrot.lane.b32.xlu0 %v96, 113
    %v726 = vpop.permute.xlu0 %725
    %v727 = vsel %vm714, %v720, %v724
    %v728 = vsel %vm714, %v722, %v726
    %v729 = vsel %vm714, %v724, %v720
    %v730 = vsel %vm714, %v726, %v722
    %s731 = scalar_lea.vmem [#allocation6], 6
    %v732 = vld [vmem:[%s731] ss:$8 sm:$0x3]
    %v734 = vlaneseq
    %v735 = vshrl.u32 %v734, 7
    %v736 = vsub.s32 0, %v735
    %v737 = vrot.slane %v732, %v736
    %v738 = vlaneseq
    %v739 = vshrl.u32 %v738, 7
    %v740 = vsub.s32 1, %v739
    %v741 = vrot.slane %v732, %v740
    %v744 = vmul.f32 %v715, %v737
    %v745 = vmul.f32 %v717, %v741
    %v746 = vmul.f32 %v716, %v737
    %v747 = vmul.f32 %v718, %v741
    %v748 = vmul.f32 %v727, %v737
    %v749 = vmul.f32 %v729, %v741
    %v750 = vmul.f32 %v728, %v737
    %v751 = vmul.f32 %v730, %v741
    %v752 = vstv %s103
    %v753 = vmul.f32 %v752, %v744
    %v754 = vmul.f32 %v752, %v745
    %v755 = vmul.f32 %v752, %v746
    %v756 = vmul.f32 %v752, %v747
    %v757 = vstv %s130
    %v758 = vmul.f32 %v757, %v748
    %v759 = vmul.f32 %v757, %v749
    %v760 = vmul.f32 %v757, %v750
    %v761 = vmul.f32 %v757, %v751
    %v762 = vadd.f32 %v753, %v758
    %v763 = vadd.f32 %v754, %v759
    %v764 = vadd.f32 %v755, %v760
    %v765 = vadd.f32 %v756, %v761
    %v766 = vadd.f32 %v666, %v762
    %v767 = vadd.f32 %v667, %v763
    %v768 = vadd.f32 %v668, %v764
    %v769 = vadd.f32 %v669, %v765
    %v770 = vstv %s112
    %v771 = vmul.f32 %v770, %v744
    %v772 = vmul.f32 %v770, %v745
    %v773 = vmul.f32 %v770, %v746
    %v774 = vmul.f32 %v770, %v747
    %v775 = vstv %s139
    %v776 = vmul.f32 %v775, %v748
    %v777 = vmul.f32 %v775, %v749
    %v778 = vmul.f32 %v775, %v750
    %v779 = vmul.f32 %v775, %v751
    %v780 = vadd.f32 %v771, %v776
    %v781 = vadd.f32 %v772, %v777
    %v782 = vadd.f32 %v773, %v778
    %v783 = vadd.f32 %v774, %v779
    %v784 = vadd.f32 %v684, %v780
    %v785 = vadd.f32 %v685, %v781
    %v786 = vadd.f32 %v686, %v782
    %v787 = vadd.f32 %v687, %v783
    %v788 = vstv %s121
    %v789 = vmul.f32 %v788, %v744
    %v790 = vmul.f32 %v788, %v745
    %v791 = vmul.f32 %v788, %v746
    %v792 = vmul.f32 %v788, %v747
    %v793 = vstv %s148
    %v794 = vmul.f32 %v793, %v748
    %v795 = vmul.f32 %v793, %v749
    %v796 = vmul.f32 %v793, %v750
    %v797 = vmul.f32 %v793, %v751
    %v798 = vadd.f32 %v789, %v794
    %v799 = vadd.f32 %v790, %v795
    %v800 = vadd.f32 %v791, %v796
    %v801 = vadd.f32 %v792, %v797
    %v802 = vadd.f32 %v702, %v798
    %v803 = vadd.f32 %v703, %v799
    %v804 = vadd.f32 %v704, %v800
    %v805 = vadd.f32 %v705, %v801
    %806 = vrot.lane.b32.xlu0 %v89, 112
    %v807 = vpop.permute.xlu0 %806
    %808 = vrot.lane.b32.xlu0 %v91, 112
    %v809 = vpop.permute.xlu0 %808
    %810 = vrot.lane.b32.xlu0 %v90, 112
    %v811 = vpop.permute.xlu0 %810
    %812 = vrot.lane.b32.xlu0 %v92, 112
    %v813 = vpop.permute.xlu0 %812
    %vm814 = vcmp.lt.s32.totalorder %v160, 112
    %v815 = vsel %vm814, %v807, %v811
    %v816 = vsel %vm814, %v809, %v813
    %v817 = vsel %vm814, %v811, %v807
    %v818 = vsel %vm814, %v813, %v809
    %819 = vrot.lane.b32.xlu0 %v93, 112
    %v820 = vpop.permute.xlu0 %819
    %821 = vrot.lane.b32.xlu0 %v95, 112
    %v822 = vpop.permute.xlu0 %821
    %823 = vrot.lane.b32.xlu0 %v94, 112
    %v824 = vpop.permute.xlu0 %823
    %825 = vrot.lane.b32.xlu0 %v96, 112
    %v826 = vpop.permute.xlu0 %825
    %v827 = vsel %vm814, %v820, %v824
    %v828 = vsel %vm814, %v822, %v826
    %v829 = vsel %vm814, %v824, %v820
    %v830 = vsel %vm814, %v826, %v822
    %s831 = scalar_lea.vmem [#allocation6], 7
    %v832 = vld [vmem:[%s831] ss:$8 sm:$0x3]
    %v834 = vlaneseq
    %v835 = vshrl.u32 %v834, 7
    %v836 = vsub.s32 0, %v835
    %v837 = vrot.slane %v832, %v836
    %v838 = vlaneseq
    %v839 = vshrl.u32 %v838, 7
    %v840 = vsub.s32 1, %v839
    %v841 = vrot.slane %v832, %v840
    %v844 = vmul.f32 %v815, %v837
    %v845 = vmul.f32 %v817, %v841
    %v846 = vmul.f32 %v816, %v837
    %v847 = vmul.f32 %v818, %v841
    %v848 = vmul.f32 %v827, %v837
    %v849 = vmul.f32 %v829, %v841
    %v850 = vmul.f32 %v828, %v837
    %v851 = vmul.f32 %v830, %v841
    %v852 = vstv %s104
    %v853 = vmul.f32 %v852, %v844
    %v854 = vmul.f32 %v852, %v845
    %v855 = vmul.f32 %v852, %v846
    %v856 = vmul.f32 %v852, %v847
    %v857 = vstv %s131
    %v858 = vmul.f32 %v857, %v848
    %v859 = vmul.f32 %v857, %v849
    %v860 = vmul.f32 %v857, %v850
    %v861 = vmul.f32 %v857, %v851
    %v862 = vadd.f32 %v853, %v858
    %v863 = vadd.f32 %v854, %v859
    %v864 = vadd.f32 %v855, %v860
    %v865 = vadd.f32 %v856, %v861
    %v866 = vadd.f32 %v766, %v862
    %v867 = vadd.f32 %v767, %v863
    %v868 = vadd.f32 %v768, %v864
    %v869 = vadd.f32 %v769, %v865
    %v870 = vstv %s113
    %v871 = vmul.f32 %v870, %v844
    %v872 = vmul.f32 %v870, %v845
    %v873 = vmul.f32 %v870, %v846
    %v874 = vmul.f32 %v870, %v847
    %v875 = vstv %s140
    %v876 = vmul.f32 %v875, %v848
    %v877 = vmul.f32 %v875, %v849
    %v878 = vmul.f32 %v875, %v850
    %v879 = vmul.f32 %v875, %v851
    %v880 = vadd.f32 %v871, %v876
    %v881 = vadd.f32 %v872, %v877
    %v882 = vadd.f32 %v873, %v878
    %v883 = vadd.f32 %v874, %v879
    %v884 = vadd.f32 %v784, %v880
    %v885 = vadd.f32 %v785, %v881
    %v886 = vadd.f32 %v786, %v882
    %v887 = vadd.f32 %v787, %v883
    %v888 = vstv %s122
    %v889 = vmul.f32 %v888, %v844
    %v890 = vmul.f32 %v888, %v845
    %v891 = vmul.f32 %v888, %v846
    %v892 = vmul.f32 %v888, %v847
    %v893 = vstv %s149
    %v894 = vmul.f32 %v893, %v848
    %v895 = vmul.f32 %v893, %v849
    %v896 = vmul.f32 %v893, %v850
    %v897 = vmul.f32 %v893, %v851
    %v898 = vadd.f32 %v889, %v894
    %v899 = vadd.f32 %v890, %v895
    %v900 = vadd.f32 %v891, %v896
    %v901 = vadd.f32 %v892, %v897
    %v902 = vadd.f32 %v802, %v898
    %v903 = vadd.f32 %v803, %v899
    %v904 = vadd.f32 %v804, %v900
    %v905 = vadd.f32 %v805, %v901
    %906 = vrot.lane.b32.xlu0 %v89, 111
    %v907 = vpop.permute.xlu0 %906
    %908 = vrot.lane.b32.xlu0 %v91, 111
    %v909 = vpop.permute.xlu0 %908
    %910 = vrot.lane.b32.xlu0 %v90, 111
    %v911 = vpop.permute.xlu0 %910
    %912 = vrot.lane.b32.xlu0 %v92, 111
    %v913 = vpop.permute.xlu0 %912
    %vm914 = vcmp.lt.s32.totalorder %v160, 111
    %v915 = vsel %vm914, %v907, %v911
    %v916 = vsel %vm914, %v909, %v913
    %v917 = vsel %vm914, %v911, %v907
    %v918 = vsel %vm914, %v913, %v909
    %919 = vrot.lane.b32.xlu0 %v93, 111
    %v920 = vpop.permute.xlu0 %919
    %921 = vrot.lane.b32.xlu0 %v95, 111
    %v922 = vpop.permute.xlu0 %921
    %923 = vrot.lane.b32.xlu0 %v94, 111
    %v924 = vpop.permute.xlu0 %923
    %925 = vrot.lane.b32.xlu0 %v96, 111
    %v926 = vpop.permute.xlu0 %925
    %v927 = vsel %vm914, %v920, %v924
    %v928 = vsel %vm914, %v922, %v926
    %v929 = vsel %vm914, %v924, %v920
    %v930 = vsel %vm914, %v926, %v922
    %s931 = scalar_lea.vmem [#allocation6], 16
    %v932 = vld [vmem:[%s931] ss:$8 sm:$0x3]
    %v934 = vlaneseq
    %v935 = vshrl.u32 %v934, 7
    %v936 = vsub.s32 0, %v935
    %v937 = vrot.slane %v932, %v936
    %v938 = vlaneseq
    %v939 = vshrl.u32 %v938, 7
    %v940 = vsub.s32 1, %v939
    %v941 = vrot.slane %v932, %v940
    %v944 = vmul.f32 %v915, %v937
    %v945 = vmul.f32 %v917, %v941
    %v946 = vmul.f32 %v916, %v937
    %v947 = vmul.f32 %v918, %v941
    %v948 = vmul.f32 %v927, %v937
    %v949 = vmul.f32 %v929, %v941
    %v950 = vmul.f32 %v928, %v937
    %v951 = vmul.f32 %v930, %v941
    %v952 = vstv %s105
    %v953 = vmul.f32 %v952, %v944
    %v954 = vmul.f32 %v952, %v945
    %v955 = vmul.f32 %v952, %v946
    %v956 = vmul.f32 %v952, %v947
    %v957 = vstv %s132
    %v958 = vmul.f32 %v957, %v948
    %v959 = vmul.f32 %v957, %v949
    %v960 = vmul.f32 %v957, %v950
    %v961 = vmul.f32 %v957, %v951
    %v962 = vadd.f32 %v953, %v958
    %v963 = vadd.f32 %v954, %v959
    %v964 = vadd.f32 %v955, %v960
    %v965 = vadd.f32 %v956, %v961
    %v966 = vadd.f32 %v866, %v962
    %v967 = vadd.f32 %v867, %v963
    %v968 = vadd.f32 %v868, %v964
    %v969 = vadd.f32 %v869, %v965
    %v970 = vstv %s114
    %v971 = vmul.f32 %v970, %v944
    %v972 = vmul.f32 %v970, %v945
    %v973 = vmul.f32 %v970, %v946
    %v974 = vmul.f32 %v970, %v947
    %v975 = vstv %s141
    %v976 = vmul.f32 %v975, %v948
    %v977 = vmul.f32 %v975, %v949
    %v978 = vmul.f32 %v975, %v950
    %v979 = vmul.f32 %v975, %v951
    %v980 = vadd.f32 %v971, %v976
    %v981 = vadd.f32 %v972, %v977
    %v982 = vadd.f32 %v973, %v978
    %v983 = vadd.f32 %v974, %v979
    %v984 = vadd.f32 %v884, %v980
    %v985 = vadd.f32 %v885, %v981
    %v986 = vadd.f32 %v886, %v982
    %v987 = vadd.f32 %v887, %v983
    %v988 = vstv %s123
    %v989 = vmul.f32 %v988, %v944
    %v990 = vmul.f32 %v988, %v945
    %v991 = vmul.f32 %v988, %v946
    %v992 = vmul.f32 %v988, %v947
    %v993 = vstv %s150
    %v994 = vmul.f32 %v993, %v948
    %v995 = vmul.f32 %v993, %v949
    %v996 = vmul.f32 %v993, %v950
    %v997 = vmul.f32 %v993, %v951
    %v998 = vadd.f32 %v989, %v994
    %v999 = vadd.f32 %v990, %v995
    %v1000 = vadd.f32 %v991, %v996
    %v1001 = vadd.f32 %v992, %v997
    %v1002 = vadd.f32 %v902, %v998
    %v1003 = vadd.f32 %v903, %v999
    %v1004 = vadd.f32 %v904, %v1000
    %v1005 = vadd.f32 %v905, %v1001
    %v1006 = vrot.slane %v966, 7
    %v1007 = vrot.slane %v967, 7
    %v1008 = vrot.slane %v968, 7
    %v1009 = vrot.slane %v969, 7
    %v1010 = vlaneseq
    %v1011 = vshrl.u32 %v1010, 7
    %vm1012 = vcmp.lt.s32.totalorder %v1011, 1
    %v1013 = vsel %vm1012, %v1006, %v1008
    %v1014 = vsel %vm1012, %v1007, %v1009
    %v1015 = vsel %vm1012, %v1008, %v1006
    %v1016 = vsel %vm1012, %v1009, %v1007
    %v1017 = vrot.slane %v1002, 1
    %v1018 = vrot.slane %v1003, 1
    %v1019 = vrot.slane %v1004, 1
    %v1020 = vrot.slane %v1005, 1
    %vm1021 = vcmp.lt.s32.totalorder %v1011, 7
    %v1022 = vsel %vm1021, %v1017, %v1019
    %v1023 = vsel %vm1021, %v1018, %v1020
    %v1024 = vsel %vm1021, %v1019, %v1017
    %v1025 = vsel %vm1021, %v1020, %v1018
    %vm1026 = vcmp.ge.s32.totalorder %v1011, 1
    %v1027 = vsel %vm1026, %v1015, 0.0
    %v1028 = vsel %vm1026, %v1016, 0.0
    %v1029 = vsel %vm1026, %v1013, 0.0
    %v1030 = vsel %vm1026, %v1014, 0.0
    %vm1031 = vcmp.le.s32.totalorder %v1011, 6
    %v1032 = vsel %vm1031, %v1022, 0.0
    %v1033 = vsel %vm1031, %v1023, 0.0
    %v1034 = vsel %vm1031, %v1024, 0.0
    %v1035 = vsel %vm1031, %v1025, 0.0
    %v1036 = vadd.f32 %v984, %v1027
    %v1037 = vadd.f32 %v985, %v1028
    %v1038 = vadd.f32 %v986, %v1029
    %v1039 = vadd.f32 %v987, %v1030
    %v1040 = vadd.f32 %v1036, %v1032
    %v1041 = vadd.f32 %v1037, %v1033
    %v1042 = vadd.f32 %v1038, %v1034
    %v1043 = vadd.f32 %v1039, %v1035
    %v1044 = vxor.u32 %v1040, 2147483648
    %v1045 = vxor.u32 %v1041, 2147483648
    %v1046 = vxor.u32 %v1042, 2147483648
    %v1047 = vxor.u32 %v1043, 2147483648
    %v1048 = vmul.f32 %v1044, 1.442695
    %v1049 = vpow.pop %v1048
    %v1050 = vmul.f32 %v1045, 1.442695
    %v1051 = vpow.pop %v1050
    %v1052 = vmul.f32 %v1046, 1.442695
    %v1053 = vpow.pop %v1052
    %v1054 = vmul.f32 %v1047, 1.442695
    %v1055 = vpow.pop %v1054
    %v1056 = vadd.f32 %v1049, 1.0
    %v1057 = vadd.f32 %v1051, 1.0
    %v1058 = vadd.f32 %v1053, 1.0
    %v1059 = vadd.f32 %v1055, 1.0
    %v1060 = vrcp.pop %v1056
    %v1061 = vmul.f32 1.0, %v1060
    %v1062 = vrcp.pop %v1057
    %v1063 = vmul.f32 1.0, %v1062
    %v1064 = vrcp.pop %v1058
    %v1065 = vmul.f32 1.0, %v1064
    %v1066 = vrcp.pop %v1059
    %v1067 = vmul.f32 1.0, %v1066
    %v1068 = vxor.u32 %v1061, 2147483648
    %v1069 = vxor.u32 %v1063, 2147483648
    %v1070 = vxor.u32 %v1065, 2147483648
    %v1071 = vxor.u32 %v1067, 2147483648
    %v1072 = vmul.f32 %v1068, 1.442695
    %v1073 = vpow.pop %v1072
    %v1074 = vmul.f32 %v1069, 1.442695
    %v1075 = vpow.pop %v1074
    %v1076 = vmul.f32 %v1070, 1.442695
    %v1077 = vpow.pop %v1076
    %v1078 = vmul.f32 %v1071, 1.442695
    %v1079 = vpow.pop %v1078
    %v1080 = vadd.f32 %v1073, 1.0
    %v1081 = vadd.f32 %v1075, 1.0
    %v1082 = vadd.f32 %v1077, 1.0
    %v1083 = vadd.f32 %v1079, 1.0
    %v1084 = vrcp.pop %v1080
    %v1085 = vmul.f32 1.0, %v1084
    %v1086 = vrcp.pop %v1081
    %v1087 = vmul.f32 1.0, %v1086
    %v1088 = vrcp.pop %v1082
    %v1089 = vmul.f32 1.0, %v1088
    %v1090 = vrcp.pop %v1083
    %v1091 = vmul.f32 1.0, %v1090
    %1092 = vst [vmem:[#allocation9] sm:$0xff] %v1085
    %1093 = vst [vmem:[#allocation9 + $0x8] sm:$0xff] %v1087
    %1094 = vst [vmem:[#allocation9 + $0x10] sm:$0xff] %v1089
    %1095 = vst [vmem:[#allocation9 + $0x18] sm:$0xff] %v1091
    // Predicated region
    $region26: #{tpu_custom_call.1} parent=1 // pred_check
      _
    $region27: #{tpu_custom_call.1} parent=1 // pred_check_branch
      %1097 = sbr.rel (0) target = $region29
    $region28: #{tpu_custom_call.1} parent=1 // pred_region
      %s1099 = ssub.s32 512, 512
      %1100 = vsyncadd [#allocation4], %s1099
      %s1101 = sshll.u32 [#allocation9], 4
      %s1102 = int_to_ptr.vmem [resolvable:$true] %s1101
      %1107 = dma.vmem_to_hbm [thread:$0]  %s1102, 512, %s3, [#allocation4], 256, 256, 16
    $region29: #{tpu_custom_call.1} parent=1 // pred_fallthru
      _
    // Predicated region
    $region30: #{tpu_custom_call.1} parent=1 // pred_check
      _
    $region31: #{tpu_custom_call.1} parent=1 // pred_check_branch
      %1109 = sbr.rel (0) target = $region33
    $region32: #{tpu_custom_call.1} parent=1 // pred_region
      %1110 = dma.done [#allocation4], 512
    $region33: #{tpu_custom_call.1} parent=1 // pred_fallthru
      _
    %1111 = vsyncpa [#allocation3], 1
    %1112 = vsyncpa [#allocation8], 1
    %1113 = vsyncpa [#allocation4], 1
    %1114 = vsyncpa [#allocation5], 1

</llo_original>
